<compile_context>
chip_gen: v7x
topology: tpu7x:2x2x1
jax: 0.10.0
libtpu: 0.0.40
codegen_flags: <defaults>
</compile_context>

<pallas_src>
import functools

import numpy as np
import jax
import jax.numpy as jnp
from jax.experimental import pallas as pl
from jax.experimental.pallas import tpu as pltpu

_LANE = 128
_MXU_M = 256          # row-tile granularity (covers v5e's 128 as well)
_NEG_MASK = -1e30     # bias for padded senses -> exp() underflows to exactly 0


def _round_up(x, m):
    return ((x + m - 1) // m) * m


def _vmem_cap_bytes():
    """75% of physical VMEM: ~48 MiB on v7x (64 MiB), ~96 MiB on v5e/v6e (128 MiB)."""
    cap = 64 << 20
    try:
        info = pltpu.get_tpu_info()
        cap = int(getattr(info, "vmem_capacity_bytes", cap))
    except Exception:
        pass
    return (cap // 4) * 3


def _vmem_limit_bytes(tile_n, token_pad, hid_pad, k_pad, sense_pad, cap):
    # double-buffered pipeline tiles (bf16 x in, bf16 out)
    io = 2 * tile_n * (token_pad + sense_pad) * 2
    # per-modal weights (double-buffered by the default pipeline)
    w = 2 * (token_pad * hid_pad * 2 + hid_pad * 4
             + hid_pad * k_pad * 2 + k_pad * 4
             + k_pad * sense_pad * 2)
    # live intermediates in one grid step: h (f32 + bf16 copy),
    # logits/e/a (3x f32 + bf16 a), f32 matmul-3 result
    inter = (tile_n * hid_pad * (4 + 2)
             + tile_n * k_pad * (3 * 4 + 2)
             + tile_n * sense_pad * 4)
    need = int((io + w + inter) * 1.3)          # 30% headroom
    return int(min(max(need, 16 << 20), cap))


def _fused_sense_kernel(block_modal_ref, x_ref, w1_ref, b1_ref, w2_ref, b2_ref,
                        s_ref, o_ref):
    """One row-tile of one modality: MLP -> masked softmax -> sense mixing."""
    del block_modal_ref  # consumed by the index_maps only
    # h = relu(x @ W1 + b1): bf16 MXU matmul, f32 accumulate, f32 elementwise.
    h = jnp.dot(x_ref[...], w1_ref[...], preferred_element_type=jnp.float32)
    h = jnp.maximum(h + b1_ref[...], 0.0)
    # Sense logits over the 128-padded sense axis; padded senses carry a -1e30
    # bias so they vanish under the numerically-stable softmax.
    logits = jnp.dot(h.astype(jnp.bfloat16), w2_ref[...],
                     preferred_element_type=jnp.float32) + b2_ref[...]
    m = jnp.max(logits, axis=-1, keepdims=True)
    e = jnp.exp(logits - m)
    a = e * pl.reciprocal(jnp.sum(e, axis=-1, keepdims=True), approx=True)
    # Mix the learned sense vectors (padded senses: zero prob and zero rows).
    o_ref[...] = jnp.dot(a.astype(jnp.bfloat16), s_ref[...],
                         preferred_element_type=jnp.float32).astype(o_ref.dtype)


@functools.partial(jax.jit, static_argnames=("tile_n", "vmem_cap"))
def fused_sense_forward(block_modal, x, w1, b1, w2, b2, s, *, tile_n, vmem_cap):
    """Single fused, row-tiled pallas_call covering every modality's rows."""
    total_rows, token_pad = x.shape
    hid_pad = w1.shape[-1]
    k_pad = w2.shape[-1]
    sense_pad = s.shape[-1]
    num_blocks = total_rows // tile_n

    per_modal_weight_bytes = (token_pad * hid_pad * 2 + hid_pad * 4
                              + hid_pad * k_pad * 2 + k_pad * 4
                              + k_pad * sense_pad * 2)
    cost = pl.CostEstimate(
        flops=2 * total_rows * (token_pad * hid_pad + hid_pad * k_pad
                                + k_pad * sense_pad),
        transcendentals=total_rows * (k_pad + 1),
        bytes_accessed=(total_rows * (token_pad + sense_pad) * 2
                        + num_blocks * per_modal_weight_bytes),
    )

    grid_spec = pltpu.PrefetchScalarGridSpec(
        num_scalar_prefetch=1,            # per-block modal index, lives in SMEM
        grid=(num_blocks,),
        in_specs=[
            # row tile of the fused (padded) input
            pl.BlockSpec((tile_n, token_pad), lambda i, bm: (i, 0)),
            # per-modal weights selected via the prefetched modal index.
            # NOTE: left at default double-buffering -- after 128-padding each
            # modality's weights are only ~0.2 MiB; use pipeline_mode=
            # pl.Buffered(1) here if the weight dims grow into the MiB range.
            pl.BlockSpec((None, token_pad, hid_pad), lambda i, bm: (bm[i], 0, 0)),
            pl.BlockSpec((None, 1, hid_pad), lambda i, bm: (bm[i], 0, 0)),
            pl.BlockSpec((None, hid_pad, k_pad), lambda i, bm: (bm[i], 0, 0)),
            pl.BlockSpec((None, 1, k_pad), lambda i, bm: (bm[i], 0, 0)),
            pl.BlockSpec((None, k_pad, sense_pad), lambda i, bm: (bm[i], 0, 0)),
        ],
        out_specs=pl.BlockSpec((tile_n, sense_pad), lambda i, bm: (i, 0)),
    )
    return pl.pallas_call(
        _fused_sense_kernel,
        out_shape=jax.ShapeDtypeStruct((total_rows, sense_pad), jnp.bfloat16),
        grid_spec=grid_spec,
        cost_estimate=cost,
        compiler_params=pltpu.CompilerParams(
            # Row tiles are independent -> megacore-shardable; all blocks have
            # the same size, so the v7x two-TC split is balanced by construction.
            dimension_semantics=("parallel",),
            vmem_limit_bytes=_vmem_limit_bytes(
                tile_n, token_pad, hid_pad, k_pad, sense_pad, vmem_cap),
        ),
    )(block_modal, x, w1, b1, w2, b2, s)


class GetSenseForAll:
    """JAX/Pallas port of get_sense_for_all (fused across modalities)."""

    def __init__(self, key, k_assignment, token_dim, hid_dim, sense_dim,
                 modals, modal_idx, tile_rows=512):
        self.modals = list(modals)
        self.modal_idx = modal_idx
        self.k_assignment = dict(k_assignment)
        self.token_dim = token_dim
        self.hid_dim = hid_dim
        self.sense_dim = sense_dim
        for m in self.modals:
            assert k_assignment[m] >= 1, f"modal {m!r} needs at least one sense"
        # Fixed row tile: multiple of 256 (bf16 packing + full MXU M tiles on
        # every generation); never derived from per-batch row counts.
        self.tile_rows = max(_MXU_M, _round_up(tile_rows, _MXU_M))
        # Lane-dense (128-multiple) padding of every contraction / output dim.
        self.token_pad = _round_up(token_dim, _LANE)
        self.hid_pad = _round_up(hid_dim, _LANE)
        self.k_pad = _round_up(max(k_assignment[m] for m in self.modals), _LANE)
        self.sense_pad = _round_up(sense_dim, _LANE)
        self.weight_idx = {m: i for i, m in enumerate(self.modals)}
        self.vmem_cap = _vmem_cap_bytes()
        self._plan_cache = {}

        keys = jax.random.split(key, len(self.modals))
        w1s, b1s, w2s, b2s, ss = [], [], [], [], []
        for i, modal in enumerate(self.modals):
            k = k_assignment[modal]
            k1, k2, k3, k4, k5 = jax.random.split(keys[i], 5)
            w1 = 0.1 * jax.random.normal(k1, (token_dim, hid_dim), jnp.float32)
            b1 = 0.1 * jax.random.normal(k2, (1, hid_dim), jnp.float32)
            w2 = 0.1 * jax.random.normal(k3, (hid_dim, k), jnp.float32)
            b2 = 0.1 * jax.random.normal(k4, (1, k), jnp.float32)
            s = 0.1 * jax.random.normal(k5, (k, sense_dim), jnp.float32)
            # zero-pad every dim to its lane-aligned size; padded sense logits
            # get a -1e30 bias so they carry exactly zero probability mass.
            w1s.append(jnp.pad(w1, ((0, self.token_pad - token_dim),
                                    (0, self.hid_pad - hid_dim))))
            b1s.append(jnp.pad(b1, ((0, 0), (0, self.hid_pad - hid_dim))))
            w2s.append(jnp.pad(w2, ((0, self.hid_pad - hid_dim),
                                    (0, self.k_pad - k))))
            b2s.append(jnp.pad(b2, ((0, 0), (0, self.k_pad - k)),
                               constant_values=_NEG_MASK))
            ss.append(jnp.pad(s, ((0, self.k_pad - k),
                                  (0, self.sense_pad - sense_dim))))
        # MXU operands in bf16, biases stay f32 (f32 elementwise path).
        self.w1 = jnp.stack(w1s).astype(jnp.bfloat16)
        self.b1 = jnp.stack(b1s).astype(jnp.float32)
        self.w2 = jnp.stack(w2s).astype(jnp.bfloat16)
        self.b2 = jnp.stack(b2s).astype(jnp.float32)
        self.s = jnp.stack(ss).astype(jnp.bfloat16)

    def _plan(self, sig):
        """Static per-batch-composition bookkeeping (numpy-built, cached)."""
        plan = self._plan_cache.get(sig)
        if plan is not None:
            return plan
        tile_n = self.tile_rows
        block_modal, rows, labels, segments, padded_counts = [], [], [], [], []
        off = 0
        last = 0
        needs_gather = False
        for modal, n in sig:
            padded_n = _round_up(max(n, 1), tile_n)
            block_modal.append(
                np.full(padded_n // tile_n, self.weight_idx[modal], np.int32))
            rows.append(np.arange(off, off + n, dtype=np.int32))
            labels.append(np.full(n, self.modal_idx[modal], np.int32))
            segments.append((last, last + n))
            padded_counts.append(padded_n)
            needs_gather |= padded_n != n
            off += padded_n
            last += n
        plan = {
            "block_modal": jnp.asarray(np.concatenate(block_modal)),
            "row_gather": (jnp.asarray(np.concatenate(rows))
                           if needs_gather else None),
            "labels": jnp.asarray(np.concatenate(labels)),
            "segments": segments,
            "padded_counts": tuple(padded_counts),
        }
        self._plan_cache[sig] = plan
        return plan

    def __call__(self, batch_embeddings):
        items = list(batch_embeddings.items())
        sig = tuple((modal, int(emb.shape[0])) for modal, emb in items)
        plan = self._plan(sig)

        # Pad each modality's rows up to the fixed tile and its token columns
        # to the lane-aligned width; one concat total.
        col_pad = self.token_pad - self.token_dim
        x_parts = []
        for (modal, emb), padded_n in zip(items, plan["padded_counts"]):
            xm = jnp.pad(emb.astype(jnp.bfloat16),
                         ((0, padded_n - emb.shape[0]), (0, col_pad)))
            x_parts.append(xm)
        x_padded = (x_parts[0] if len(x_parts) == 1
                    else jnp.concatenate(x_parts, axis=0))

        out_padded = fused_sense_forward(
            plan["block_modal"], x_padded,
            self.w1, self.b1, self.w2, self.b2, self.s,
            tile_n=self.tile_rows, vmem_cap=self.vmem_cap)

        # Compact valid rows with a single gather (skipped when the padded
        # layout is already contiguous), slice valid sense columns, cast f32.
        if plan["row_gather"] is None:
            out = out_padded
        else:
            out = jnp.take(out_padded, plan["row_gather"], axis=0)
        sense_embeddings = out[:, : self.sense_dim].astype(jnp.float32)
        return {
            "sense_embeddings": sense_embeddings,
            "labels": plan["labels"],
            "segments": plan["segments"],
        }

    def reference_forward(self, batch_embeddings):
        """Pure-JAX (non-Pallas) parity reference on the unpadded parameters."""
        outs = []
        for modal, emb in batch_embeddings.items():
            i = self.weight_idx[modal]
            k = self.k_assignment[modal]
            w1 = self.w1[i, : self.token_dim, : self.hid_dim].astype(jnp.float32)
            b1 = self.b1[i, :, : self.hid_dim]
            w2 = self.w2[i, : self.hid_dim, :k].astype(jnp.float32)
            b2 = self.b2[i, :, :k]
            s = self.s[i, :k, : self.sense_dim].astype(jnp.float32)
            x = emb.astype(jnp.bfloat16).astype(jnp.float32)
            h = jnp.maximum(x @ w1 + b1, 0.0)
            a = jax.nn.softmax(h @ w2 + b2, axis=-1)
            outs.append(a @ s)
        return jnp.concatenate(outs, axis=0)


if __name__ == "__main__":
    token_dim, hid_dim, sense_dim = 32, 32, 32
    modals = ["text", "image"]
    modal_idx = {"text": 0, "image": 1}
    k_assignment = {"text": 4, "image": 8}

    root = jax.random.PRNGKey(0)
    k_model, k_text, k_image = jax.random.split(root, 3)

    batch_embeddings = {
        "text": jax.random.normal(k_text, (8, token_dim), jnp.float32),
        "image": jax.random.normal(k_image, (4, token_dim), jnp.float32),
    }

    model = GetSenseForAll(
        k_model, k_assignment, token_dim, hid_dim, sense_dim, modals, modal_idx
    )
    out = model(batch_embeddings)
    jax.block_until_ready(out["sense_embeddings"])
    jax.block_until_ready(out["labels"])

    assert out["sense_embeddings"].shape == (12, sense_dim)
    assert out["sense_embeddings"].dtype == jnp.float32
    assert out["labels"].shape == (12,)
    assert out["segments"] == [(0, 8), (8, 12)]
    assert bool(jnp.all(jnp.isfinite(out["sense_embeddings"])))

    # parity against a pure-JAX reference (bf16 weights/activations/output plus
    # approx reciprocal in the kernel -> loose tolerance)
    ref = model.reference_forward(batch_embeddings)
    assert bool(jnp.allclose(out["sense_embeddings"], ref, rtol=5e-2, atol=5e-2)), (
        float(jnp.max(jnp.abs(out["sense_embeddings"] - ref))))

    # second call with the same composition reuses the cached plan / jit trace
    out2 = model(batch_embeddings)
    jax.block_until_ready(out2["sense_embeddings"])

    print("KERNEL_OK")
</pallas_src>

<mosaic_0001>
module attributes {stable_mosaic.version = 11 : i64} {
  func.func @_fused_sense_kernel(%arg0: i32, %arg1: memref<2xi32, #tpu.memory_space<smem>>, %arg2: memref<512x128xbf16, #tpu.memory_space<vmem>>, %arg3: memref<1x128x128xbf16, #tpu.memory_space<vmem>>, %arg4: memref<1x1x128xf32, #tpu.memory_space<vmem>>, %arg5: memref<1x128x128xbf16, #tpu.memory_space<vmem>>, %arg6: memref<1x1x128xf32, #tpu.memory_space<vmem>>, %arg7: memref<1x128x128xbf16, #tpu.memory_space<vmem>>, %arg8: memref<512x128xbf16, #tpu.memory_space<vmem>>) attributes {dimension_semantics = [#tpu.dimension_semantics<parallel>], iteration_bounds = array<i64: 2>, scalar_prefetch = 1 : i64, scratch_operands = 0 : i64, tpu.core_type = #tpu.core_type<tc>, window_params = [{transform_indices = @transform_0, window_bounds = array<i64: 512, 128>}, {transform_indices = @transform_1, window_bounds = array<i64: 1, 128, 128>}, {transform_indices = @transform_2, window_bounds = array<i64: 1, 1, 128>}, {transform_indices = @transform_3, window_bounds = array<i64: 1, 128, 128>}, {transform_indices = @transform_4, window_bounds = array<i64: 1, 1, 128>}, {transform_indices = @transform_5, window_bounds = array<i64: 1, 128, 128>}, {transform_indices = @transform_6, window_bounds = array<i64: 512, 128>}]} {
    %c0 = arith.constant 0 : index
    %c0_0 = arith.constant 0 : index
    %0 = vector.load %arg2[%c0, %c0_0] : memref<512x128xbf16, #tpu.memory_space<vmem>>, vector<512x128xbf16>
    %c0_1 = arith.constant 0 : index
    %c0_2 = arith.constant 0 : index
    %c0_3 = arith.constant 0 : index
    %1 = vector.load %arg3[%c0_1, %c0_2, %c0_3] : memref<1x128x128xbf16, #tpu.memory_space<vmem>>, vector<1x128x128xbf16>
    %2 = vector.shape_cast %1 : vector<1x128x128xbf16> to vector<128x128xbf16>
    %cst = arith.constant dense<0.000000e+00> : vector<512x128xf32>
    %3 = tpu.matmul %0, %2, %cst {dimension_numbers = #tpu.dot_dimension_numbers<[1], [0], [0], [1], [0, 0, 1, 1], [], []>} : vector<512x128xbf16>, vector<128x128xbf16>, vector<512x128xf32> -> vector<512x128xf32>
    %c0_4 = arith.constant 0 : index
    %c0_5 = arith.constant 0 : index
    %c0_6 = arith.constant 0 : index
    %4 = vector.load %arg4[%c0_4, %c0_5, %c0_6] : memref<1x1x128xf32, #tpu.memory_space<vmem>>, vector<1x1x128xf32>
    %5 = vector.shape_cast %4 : vector<1x1x128xf32> to vector<1x128xf32>
    %6 = vector.broadcast %5 : vector<1x128xf32> to vector<512x128xf32>
    %7 = arith.addf %3, %6 : vector<512x128xf32>
    %cst_7 = arith.constant 0.000000e+00 : f32
    %8 = vector.broadcast %cst_7 : f32 to vector<512x128xf32>
    %9 = arith.maximumf %7, %8 : vector<512x128xf32>
    %10 = arith.truncf %9 : vector<512x128xf32> to vector<512x128xbf16>
    %c0_8 = arith.constant 0 : index
    %c0_9 = arith.constant 0 : index
    %c0_10 = arith.constant 0 : index
    %11 = vector.load %arg5[%c0_8, %c0_9, %c0_10] : memref<1x128x128xbf16, #tpu.memory_space<vmem>>, vector<1x128x128xbf16>
    %12 = vector.shape_cast %11 : vector<1x128x128xbf16> to vector<128x128xbf16>
    %cst_11 = arith.constant dense<0.000000e+00> : vector<512x128xf32>
    %13 = tpu.matmul %10, %12, %cst_11 {dimension_numbers = #tpu.dot_dimension_numbers<[1], [0], [0], [1], [0, 0, 1, 1], [], []>} : vector<512x128xbf16>, vector<128x128xbf16>, vector<512x128xf32> -> vector<512x128xf32>
    %c0_12 = arith.constant 0 : index
    %c0_13 = arith.constant 0 : index
    %c0_14 = arith.constant 0 : index
    %14 = vector.load %arg6[%c0_12, %c0_13, %c0_14] : memref<1x1x128xf32, #tpu.memory_space<vmem>>, vector<1x1x128xf32>
    %15 = vector.shape_cast %14 : vector<1x1x128xf32> to vector<1x128xf32>
    %16 = vector.broadcast %15 : vector<1x128xf32> to vector<512x128xf32>
    %17 = arith.addf %13, %16 : vector<512x128xf32>
    %cst_15 = arith.constant dense<0xFF800000> : vector<512xf32>
    %18 = vector.multi_reduction <maximumf>, %17, %cst_15 [1] : vector<512x128xf32> to vector<512xf32>
    %19 = vector.shape_cast %18 : vector<512xf32> to vector<512x1xf32>
    %20 = vector.broadcast %19 : vector<512x1xf32> to vector<512x128xf32>
    %21 = arith.subf %17, %20 : vector<512x128xf32>
    %22 = math.exp %21 : vector<512x128xf32>
    %cst_16 = arith.constant dense<0.000000e+00> : vector<512xf32>
    %23 = vector.multi_reduction <add>, %22, %cst_16 [1] : vector<512x128xf32> to vector<512xf32>
    %24 = vector.shape_cast %23 : vector<512xf32> to vector<512x1xf32>
    %25 = tpu.reciprocal %24 {approx = true} : vector<512x1xf32> -> vector<512x1xf32>
    %26 = vector.broadcast %25 : vector<512x1xf32> to vector<512x128xf32>
    %27 = arith.mulf %22, %26 : vector<512x128xf32>
    %28 = arith.truncf %27 : vector<512x128xf32> to vector<512x128xbf16>
    %c0_17 = arith.constant 0 : index
    %c0_18 = arith.constant 0 : index
    %c0_19 = arith.constant 0 : index
    %29 = vector.load %arg7[%c0_17, %c0_18, %c0_19] : memref<1x128x128xbf16, #tpu.memory_space<vmem>>, vector<1x128x128xbf16>
    %30 = vector.shape_cast %29 : vector<1x128x128xbf16> to vector<128x128xbf16>
    %cst_20 = arith.constant dense<0.000000e+00> : vector<512x128xf32>
    %31 = tpu.matmul %28, %30, %cst_20 {dimension_numbers = #tpu.dot_dimension_numbers<[1], [0], [0], [1], [0, 0, 1, 1], [], []>} : vector<512x128xbf16>, vector<128x128xbf16>, vector<512x128xf32> -> vector<512x128xf32>
    %32 = arith.truncf %31 : vector<512x128xf32> to vector<512x128xbf16>
    %c0_21 = arith.constant 0 : index
    %c0_22 = arith.constant 0 : index
    %33 = vector.load %arg8[%c0_21, %c0_22] : memref<512x128xbf16, #tpu.memory_space<vmem>>, vector<512x128xbf16>
    tpu.vector_store %arg8[%c0_21, %c0_22], %32 {strides = array<i32>} : memref<512x128xbf16, #tpu.memory_space<vmem>>, vector<512x128xbf16>,
    return
  }
  func.func @transform_0(%arg0: i32, %arg1: memref<2xi32, #tpu.memory_space<smem>>) -> (i32, i32) {
    %c0_i32 = arith.constant 0 : i32
    %c0_i32_0 = arith.constant 0 : i32
    return %arg0, %c0_i32 : i32, i32
  }
  func.func @transform_1(%arg0: i32, %arg1: memref<2xi32, #tpu.memory_space<smem>>) -> (i32, i32, i32) {
    %0 = arith.index_cast %arg0 : i32 to index
    %1 = memref.load %arg1[%0] : memref<2xi32, #tpu.memory_space<smem>>
    %c0_i32 = arith.constant 0 : i32
    %c0_i32_0 = arith.constant 0 : i32
    %c0_i32_1 = arith.constant 0 : i32
    return %1, %c0_i32, %c0_i32_0 : i32, i32, i32
  }
  func.func @transform_2(%arg0: i32, %arg1: memref<2xi32, #tpu.memory_space<smem>>) -> (i32, i32, i32) {
    %0 = arith.index_cast %arg0 : i32 to index
    %1 = memref.load %arg1[%0] : memref<2xi32, #tpu.memory_space<smem>>
    %c0_i32 = arith.constant 0 : i32
    %c0_i32_0 = arith.constant 0 : i32
    %c0_i32_1 = arith.constant 0 : i32
    return %1, %c0_i32, %c0_i32_0 : i32, i32, i32
  }
  func.func @transform_3(%arg0: i32, %arg1: memref<2xi32, #tpu.memory_space<smem>>) -> (i32, i32, i32) {
    %0 = arith.index_cast %arg0 : i32 to index
    %1 = memref.load %arg1[%0] : memref<2xi32, #tpu.memory_space<smem>>
    %c0_i32 = arith.constant 0 : i32
    %c0_i32_0 = arith.constant 0 : i32
    %c0_i32_1 = arith.constant 0 : i32
    return %1, %c0_i32, %c0_i32_0 : i32, i32, i32
  }
  func.func @transform_4(%arg0: i32, %arg1: memref<2xi32, #tpu.memory_space<smem>>) -> (i32, i32, i32) {
    %0 = arith.index_cast %arg0 : i32 to index
    %1 = memref.load %arg1[%0] : memref<2xi32, #tpu.memory_space<smem>>
    %c0_i32 = arith.constant 0 : i32
    %c0_i32_0 = arith.constant 0 : i32
    %c0_i32_1 = arith.constant 0 : i32
    return %1, %c0_i32, %c0_i32_0 : i32, i32, i32
  }
  func.func @transform_5(%arg0: i32, %arg1: memref<2xi32, #tpu.memory_space<smem>>) -> (i32, i32, i32) {
    %0 = arith.index_cast %arg0 : i32 to index
    %1 = memref.load %arg1[%0] : memref<2xi32, #tpu.memory_space<smem>>
    %c0_i32 = arith.constant 0 : i32
    %c0_i32_0 = arith.constant 0 : i32
    %c0_i32_1 = arith.constant 0 : i32
    return %1, %c0_i32, %c0_i32_0 : i32, i32, i32
  }
  func.func @transform_6(%arg0: i32, %arg1: memref<2xi32, #tpu.memory_space<smem>>) -> (i32, i32) {
    %c0_i32 = arith.constant 0 : i32
    %c0_i32_0 = arith.constant 0 : i32
    return %arg0, %c0_i32 : i32, i32
  }
}

</mosaic_0001>

<llo_original>
// kernel: fused_sense_forward.1
$region0: #{fused_sense_forward.1}
  #allocation0 [shape = 'u32[]', space=smem, size = 0x4, offset = 0x4, fixed_abs, tag = 'smem constant byte address 0x4 - core index']
  #allocation1 [shape = 'u32[144,128]{1,0:T(1,128)}', space=vmem, size = 0x12000, scoped, tag = 'internal scratch']
  #allocation2 [shape = 's32[1]{0}', space=sflag, size = 0x4, scoped, tag = 'scoped memory for fused_sense_forward.1']
  #allocation3 [shape = 'u8[512]{0}', space=smem, size = 0x200, scoped, tag = 'prefetched SMEM operand 0']
  %s0 = inlined_call_operand.hbm [shape: s32[2], index: 0, kind: input, shape index: {}]
  %s1 = inlined_call_operand.hbm [shape: bf16[1024,128], index: 1, kind: input, shape index: {}]
  %s2 = inlined_call_operand.hbm [shape: bf16[2,128,128], index: 2, kind: input, shape index: {}]
  %s3 = inlined_call_operand.vmem [shape: f32[2,1,128], index: 3, kind: input, shape index: {}]
  %s4 = inlined_call_operand.hbm [shape: bf16[2,128,128], index: 4, kind: input, shape index: {}]
  %s5 = inlined_call_operand.vmem [shape: f32[2,1,128], index: 5, kind: input, shape index: {}]
  %s6 = inlined_call_operand.hbm [shape: bf16[2,128,128], index: 6, kind: input, shape index: {}]
  %s7 = inlined_call_operand.hbm [shape: bf16[1024,128], index: 7, kind: output, shape index: {}]
  %s8 = sld [smem:[#allocation0]]
  $region73: #{fused_sense_forward.1} parent=0
    _
  %s10 = ssub.s32 1, %s8
  %s11 = scalar_select 0, %s10, %s8
  %13 = dma.hbm_to_smem %s0, 16, [#allocation3], [#allocation2]
  %14 = dma.done [#allocation2], 16
  %15 = sfence
  $region1: #{fused_sense_forward.1} parent=0
    #allocation4 [shape = 'u8[262144]{0}', space=vmem, size = 0x40000, scoped, tag = 'input window, operand 1']
    #allocation5 [shape = 's32[2]{0}', space=sflag, size = 0x8, scoped, tag = 'scoped memory for fused_sense_forward.1']
    #allocation6 [shape = 's32[2]{0}', space=sflag, size = 0x8, scoped, tag = 'scoped memory for fused_sense_forward.1']
    #allocation7 [shape = 'u8[65536]{0}', space=vmem, size = 0x10000, scoped, tag = 'input window, operand 2']
    #allocation8 [shape = 's32[2]{0}', space=sflag, size = 0x8, scoped, tag = 'scoped memory for fused_sense_forward.1']
    #allocation9 [shape = 'u8[65536]{0}', space=vmem, size = 0x10000, scoped, tag = 'input window, operand 4']
    #allocation10 [shape = 'u8[65536]{0}', space=vmem, size = 0x10000, scoped, tag = 'input window, operand 6']
    #allocation11 [shape = 's32[2]{0}', space=sflag, size = 0x8, scoped, tag = 'scoped memory for fused_sense_forward.1']
    #allocation12 [shape = 'u8[262144]{0}', space=vmem, size = 0x40000, scoped, tag = 'output window, operand 0']
    %16 = vsyncpa [#allocation5], 0
    %s17 = scalar_lea.sflag [#allocation5], 1
    %18 = vsyncpa %s17, 0
    %19 = vsyncpa [#allocation8], 0
    %s20 = scalar_lea.sflag [#allocation8], 1
    %21 = vsyncpa %s20, 0
    %22 = vsyncpa [#allocation11], 0
    %s23 = scalar_lea.sflag [#allocation11], 1
    %24 = vsyncpa %s23, 0
    %25 = vsyncpa [#allocation6], 0
    %s26 = scalar_lea.sflag [#allocation6], 1
    %27 = vsyncpa %s26, 0
    loop: start=0, step=1, limit=4
    $region2: #{fused_sense_forward.1} parent=1 // loop_pre_header
      _
    $region3: #{fused_sense_forward.1} parent=1 // loop_header
      %s29 = sphi 0, %s33
      %p30 = scmp.ge.s32.totalorder %s29, 4
      %s39 = sphi 0, %s41
      %s42 = sphi 0, %s39
      %s43 = sphi 0, %s42
      %s59 = sphi 0, %s43
      %s67 = sphi 0, %s69
      %s70 = sphi 0, %s67
      %s71 = sphi 0, %s70
      %s87 = sphi 0, %s71
      %s95 = sphi 0, %s97
      %s98 = sphi 0, %s95
      %s99 = sphi 0, %s98
      %s115 = sphi 0, %s99
      %s123 = sphi 0, %s125
      %s126 = sphi 0, %s123
      %s127 = sphi 0, %s126
      %s143 = sphi 0, %s127
      %s151 = sphi 0, %s153
      %s154 = sphi 0, %s151
      %s155 = sphi 0, %s154
      %s171 = sphi 0, %s155
      %s179 = sphi 0, %s181
      %s182 = sphi 0, %s179
      %s183 = sphi 0, %s182
      %s199 = sphi 0, %s183
      %s205 = sphi 0, %s207
      %s208 = sphi 0, %s205
      %s209 = sphi 0, %s208
      %s225 = sphi 0, %s209
    $region4: #{fused_sense_forward.1} parent=1 // loop_header_branch
      %32 = sbr.rel (%p30) target = $region8
    $region5: #{fused_sense_forward.1} parent=1 // loop_body
      %s34 = ssub.s32 %s29, 1
      %s35 = ssub.s32 %s29, 2
      %s36 = sadd.s32 %s29, 1
      %s37 = ssub.s32 %s29, %s36
      %p38 = scmp.eq.s32.totalorder %s37, 0
      %s40 = sadd.s32 %s39, 1
      %s41 = scalar_select %p38, %s39, %s40
      %p44 = pneg %p38
      %p45 = scmp.eq.s32.totalorder %s29, 1
      %p46 = por %p44, %p45
      %p47 = scmp.ne.s32.totalorder %s39, %s42
      %p48 = scmp.eq.s32.totalorder %s29, 0
      %p49 = por %p47, %p48
      %p50 = scmp.ne.s32.totalorder %s39, %s42
      %p51 = scmp.eq.s32.totalorder %s34, 1
      %p52 = por %p50, %p51
      %p53 = scmp.ne.s32.totalorder %s42, %s43
      %p54 = scmp.eq.s32.totalorder %s34, 0
      %p55 = por %p53, %p54
      %p56 = scmp.ne.s32.totalorder %s42, %s43
      %p57 = scmp.eq.s32.totalorder %s35, 1
      %p58 = por %p56, %p57
      %p60 = scmp.ne.s32.totalorder %s43, %s59
      %p61 = scmp.eq.s32.totalorder %s35, 0
      %p62 = por %p60, %p61
      %s63 = sld [smem:[#allocation3 + %s29]]
      %s64 = sld [smem:[#allocation3 + %s36]]
      %s65 = ssub.s32 %s63, %s64
      %p66 = scmp.eq.s32.totalorder %s65, 0
      %s68 = sadd.s32 %s67, 1
      %s69 = scalar_select %p66, %s67, %s68
      %p72 = pneg %p66
      %p73 = scmp.eq.s32.totalorder %s29, 1
      %p74 = por %p72, %p73
      %p75 = scmp.ne.s32.totalorder %s67, %s70
      %p76 = scmp.eq.s32.totalorder %s29, 0
      %p77 = por %p75, %p76
      %p78 = scmp.ne.s32.totalorder %s67, %s70
      %p79 = scmp.eq.s32.totalorder %s34, 1
      %p80 = por %p78, %p79
      %p81 = scmp.ne.s32.totalorder %s70, %s71
      %p82 = scmp.eq.s32.totalorder %s34, 0
      %p83 = por %p81, %p82
      %p84 = scmp.ne.s32.totalorder %s70, %s71
      %p85 = scmp.eq.s32.totalorder %s35, 1
      %p86 = por %p84, %p85
      %p88 = scmp.ne.s32.totalorder %s71, %s87
      %p89 = scmp.eq.s32.totalorder %s35, 0
      %p90 = por %p88, %p89
      %s91 = sld [smem:[#allocation3 + %s29]]
      %s92 = sld [smem:[#allocation3 + %s36]]
      %s93 = ssub.s32 %s91, %s92
      %p94 = scmp.eq.s32.totalorder %s93, 0
      %s96 = sadd.s32 %s95, 1
      %s97 = scalar_select %p94, %s95, %s96
      %p100 = pneg %p94
      %p101 = scmp.eq.s32.totalorder %s29, 1
      %p102 = por %p100, %p101
      %p103 = scmp.ne.s32.totalorder %s95, %s98
      %p104 = scmp.eq.s32.totalorder %s29, 0
      %p105 = por %p103, %p104
      %p106 = scmp.ne.s32.totalorder %s95, %s98
      %p107 = scmp.eq.s32.totalorder %s34, 1
      %p108 = por %p106, %p107
      %p109 = scmp.ne.s32.totalorder %s98, %s99
      %p110 = scmp.eq.s32.totalorder %s34, 0
      %p111 = por %p109, %p110
      %p112 = scmp.ne.s32.totalorder %s98, %s99
      %p113 = scmp.eq.s32.totalorder %s35, 1
      %p114 = por %p112, %p113
      %p116 = scmp.ne.s32.totalorder %s99, %s115
      %p117 = scmp.eq.s32.totalorder %s35, 0
      %p118 = por %p116, %p117
      %s119 = sld [smem:[#allocation3 + %s29]]
      %s120 = sld [smem:[#allocation3 + %s36]]
      %s121 = ssub.s32 %s119, %s120
      %p122 = scmp.eq.s32.totalorder %s121, 0
      %s124 = sadd.s32 %s123, 1
      %s125 = scalar_select %p122, %s123, %s124
      %p128 = pneg %p122
      %p129 = scmp.eq.s32.totalorder %s29, 1
      %p130 = por %p128, %p129
      %p131 = scmp.ne.s32.totalorder %s123, %s126
      %p132 = scmp.eq.s32.totalorder %s29, 0
      %p133 = por %p131, %p132
      %p134 = scmp.ne.s32.totalorder %s123, %s126
      %p135 = scmp.eq.s32.totalorder %s34, 1
      %p136 = por %p134, %p135
      %p137 = scmp.ne.s32.totalorder %s126, %s127
      %p138 = scmp.eq.s32.totalorder %s34, 0
      %p139 = por %p137, %p138
      %p140 = scmp.ne.s32.totalorder %s126, %s127
      %p141 = scmp.eq.s32.totalorder %s35, 1
      %p142 = por %p140, %p141
      %p144 = scmp.ne.s32.totalorder %s127, %s143
      %p145 = scmp.eq.s32.totalorder %s35, 0
      %p146 = por %p144, %p145
      %s147 = sld [smem:[#allocation3 + %s29]]
      %s148 = sld [smem:[#allocation3 + %s36]]
      %s149 = ssub.s32 %s147, %s148
      %p150 = scmp.eq.s32.totalorder %s149, 0
      %s152 = sadd.s32 %s151, 1
      %s153 = scalar_select %p150, %s151, %s152
      %p156 = pneg %p150
      %p157 = scmp.eq.s32.totalorder %s29, 1
      %p158 = por %p156, %p157
      %p159 = scmp.ne.s32.totalorder %s151, %s154
      %p160 = scmp.eq.s32.totalorder %s29, 0
      %p161 = por %p159, %p160
      %p162 = scmp.ne.s32.totalorder %s151, %s154
      %p163 = scmp.eq.s32.totalorder %s34, 1
      %p164 = por %p162, %p163
      %p165 = scmp.ne.s32.totalorder %s154, %s155
      %p166 = scmp.eq.s32.totalorder %s34, 0
      %p167 = por %p165, %p166
      %p168 = scmp.ne.s32.totalorder %s154, %s155
      %p169 = scmp.eq.s32.totalorder %s35, 1
      %p170 = por %p168, %p169
      %p172 = scmp.ne.s32.totalorder %s155, %s171
      %p173 = scmp.eq.s32.totalorder %s35, 0
      %p174 = por %p172, %p173
      %s175 = sld [smem:[#allocation3 + %s29]]
      %s176 = sld [smem:[#allocation3 + %s36]]
      %s177 = ssub.s32 %s175, %s176
      %p178 = scmp.eq.s32.totalorder %s177, 0
      %s180 = sadd.s32 %s179, 1
      %s181 = scalar_select %p178, %s179, %s180
      %p184 = pneg %p178
      %p185 = scmp.eq.s32.totalorder %s29, 1
      %p186 = por %p184, %p185
      %p187 = scmp.ne.s32.totalorder %s179, %s182
      %p188 = scmp.eq.s32.totalorder %s29, 0
      %p189 = por %p187, %p188
      %p190 = scmp.ne.s32.totalorder %s179, %s182
      %p191 = scmp.eq.s32.totalorder %s34, 1
      %p192 = por %p190, %p191
      %p193 = scmp.ne.s32.totalorder %s182, %s183
      %p194 = scmp.eq.s32.totalorder %s34, 0
      %p195 = por %p193, %p194
      %p196 = scmp.ne.s32.totalorder %s182, %s183
      %p197 = scmp.eq.s32.totalorder %s35, 1
      %p198 = por %p196, %p197
      %p200 = scmp.ne.s32.totalorder %s183, %s199
      %p201 = scmp.eq.s32.totalorder %s35, 0
      %p202 = por %p200, %p201
      %s203 = ssub.s32 %s29, %s36
      %p204 = scmp.eq.s32.totalorder %s203, 0
      %s206 = sadd.s32 %s205, 1
      %s207 = scalar_select %p204, %s205, %s206
      %p210 = pneg %p204
      %p211 = scmp.eq.s32.totalorder %s29, 1
      %p212 = por %p210, %p211
      %p213 = scmp.ne.s32.totalorder %s205, %s208
      %p214 = scmp.eq.s32.totalorder %s29, 0
      %p215 = por %p213, %p214
      %p216 = scmp.ne.s32.totalorder %s205, %s208
      %p217 = scmp.eq.s32.totalorder %s34, 1
      %p218 = por %p216, %p217
      %p219 = scmp.ne.s32.totalorder %s208, %s209
      %p220 = scmp.eq.s32.totalorder %s34, 0
      %p221 = por %p219, %p220
      %p222 = scmp.ne.s32.totalorder %s208, %s209
      %p223 = scmp.eq.s32.totalorder %s35, 1
      %p224 = por %p222, %p223
      %p226 = scmp.ne.s32.totalorder %s209, %s225
      %p227 = scmp.eq.s32.totalorder %s35, 0
      %p228 = por %p226, %p227
      %p229 = scmp.le.s32.totalorder 1, %s29
      %p230 = scmp.lt.s32.totalorder %s29, 3
      %p231 = pnand %p229, %p230
      %p232 = pneg %p231
      // Predicated region
      $region9: #{fused_sense_forward.1} parent=5 // pred_check
        _
      $region10: #{fused_sense_forward.1} parent=5 // pred_check_branch
        %234 = sbr.rel (%p231) target = $region12
      $region11: #{fused_sense_forward.1} parent=5 // pred_region
        %s235 = ssub.s32 %s29, 1
      $region12: #{fused_sense_forward.1} parent=5 // pred_fallthru
        _
      %p236 = scmp.lt.s32.totalorder %s29, 2
      // Predicated region
      $region13: #{fused_sense_forward.1} parent=5 // pred_check
        %p237 = pneg %p236
      $region14: #{fused_sense_forward.1} parent=5 // pred_check_branch
        %239 = sbr.rel (%p237) target = $region16
      $region15: #{fused_sense_forward.1} parent=5 // pred_region
        // Predicated region
        $region17: #{fused_sense_forward.1} parent=15 // pred_check
          %p240 = pneg %p49
        $region18: #{fused_sense_forward.1} parent=15 // pred_check_branch
          %242 = sbr.rel (%p240) target = $region20
        $region19: #{fused_sense_forward.1} parent=15 // pred_region
          %s243 = sand.u32 %s39, 1
          %s244 = scalar_lea.sflag [#allocation5], %s243
          %s245 = sand.u32 %s39, 1
          %s246 = smul.addr %s245, 256
          %s247 = scalar_lea.vmem [#allocation4], %s246
          %s248 = smul.u32 64, %s29
          %s250 = ssub.s32 4096, 4096
          %251 = vsyncadd %s244, %s250
          %s252 = smul.addr %s248, 64
          %s253 = scalar_lea.hbm %s1, %s252
          %s254 = sshll.u32 %s247, 4
          %s255 = int_to_ptr.vmem [resolvable:$true] %s254
          %260 = dma.hbm_to_vmem [thread:$0]  %s253, 4096, %s255, %s244, 64, 64, 4
        $region20: #{fused_sense_forward.1} parent=15 // pred_fallthru
          _
        // Predicated region
        $region21: #{fused_sense_forward.1} parent=15 // pred_check
          %p261 = pneg %p77
        $region22: #{fused_sense_forward.1} parent=15 // pred_check_branch
          %263 = sbr.rel (%p261) target = $region24
        $region23: #{fused_sense_forward.1} parent=15 // pred_region
          %s264 = sand.u32 %s29, 1
          %s265 = scalar_lea.sflag [#allocation8], %s264
          %s266 = sand.u32 %s67, 1
          %s267 = smul.addr %s266, 64
          %s268 = scalar_lea.vmem [#allocation7], %s267
          %s269 = sld [smem:[#allocation3 + %s29]]
          %s271 = ssub.s32 1024, 1024
          %272 = vsyncadd %s265, %s271
          %s273 = smul.addr %s269, 16
          %s274 = smul.addr %s273, 64
          %s275 = scalar_lea.hbm %s2, %s274
          %s276 = sshll.u32 %s268, 4
          %s277 = int_to_ptr.vmem [resolvable:$true] %s276
          %282 = dma.hbm_to_vmem [thread:$0]  %s275, 1024, %s277, %s265, 64, 64, 4
        $region24: #{fused_sense_forward.1} parent=15 // pred_fallthru
          _
        // Predicated region
        $region25: #{fused_sense_forward.1} parent=15 // pred_check
          %p283 = pneg %p105
        $region26: #{fused_sense_forward.1} parent=15 // pred_check_branch
          %285 = sbr.rel (%p283) target = $region28
        $region27: #{fused_sense_forward.1} parent=15 // pred_region
          %s286 = sld [smem:[#allocation3 + %s29]]
          %p287 = scmp.lt.s32.totalorder %s286, 1
          %s288 = scalar_select %p287, %s286, 1
          %s289 = scalar_lea.vmem %s3, %s288
          %s290 = sld [smem:[#allocation3 + %s29]]
        $region28: #{fused_sense_forward.1} parent=15 // pred_fallthru
          _
        // Predicated region
        $region29: #{fused_sense_forward.1} parent=15 // pred_check
          %p291 = pneg %p133
        $region30: #{fused_sense_forward.1} parent=15 // pred_check_branch
          %293 = sbr.rel (%p291) target = $region32
        $region31: #{fused_sense_forward.1} parent=15 // pred_region
          %s294 = sand.u32 %s29, 1
          %s295 = scalar_lea.sflag [#allocation8], %s294
          %s296 = sand.u32 %s123, 1
          %s297 = smul.addr %s296, 64
          %s298 = scalar_lea.vmem [#allocation9], %s297
          %s299 = sld [smem:[#allocation3 + %s29]]
          %s301 = ssub.s32 1024, 1024
          %302 = vsyncadd %s295, %s301
          %s303 = smul.addr %s299, 16
          %s304 = smul.addr %s303, 64
          %s305 = scalar_lea.hbm %s4, %s304
          %s306 = sshll.u32 %s298, 4
          %s307 = int_to_ptr.vmem [resolvable:$true] %s306
          %312 = dma.hbm_to_vmem [thread:$0]  %s305, 1024, %s307, %s295, 64, 64, 4
        $region32: #{fused_sense_forward.1} parent=15 // pred_fallthru
          _
        // Predicated region
        $region33: #{fused_sense_forward.1} parent=15 // pred_check
          %p313 = pneg %p161
        $region34: #{fused_sense_forward.1} parent=15 // pred_check_branch
          %315 = sbr.rel (%p313) target = $region36
        $region35: #{fused_sense_forward.1} parent=15 // pred_region
          %s316 = sld [smem:[#allocation3 + %s29]]
          %p317 = scmp.lt.s32.totalorder %s316, 1
          %s318 = scalar_select %p317, %s316, 1
          %s319 = scalar_lea.vmem %s5, %s318
          %s320 = sld [smem:[#allocation3 + %s29]]
        $region36: #{fused_sense_forward.1} parent=15 // pred_fallthru
          _
        // Predicated region
        $region37: #{fused_sense_forward.1} parent=15 // pred_check
          %p321 = pneg %p189
        $region38: #{fused_sense_forward.1} parent=15 // pred_check_branch
          %323 = sbr.rel (%p321) target = $region40
        $region39: #{fused_sense_forward.1} parent=15 // pred_region
          %s324 = sand.u32 %s179, 1
          %s325 = scalar_lea.sflag [#allocation11], %s324
          %s326 = sand.u32 %s179, 1
          %s327 = smul.addr %s326, 64
          %s328 = scalar_lea.vmem [#allocation10], %s327
          %s329 = sld [smem:[#allocation3 + %s29]]
          %s331 = ssub.s32 1024, 1024
          %332 = vsyncadd %s325, %s331
          %s333 = smul.addr %s329, 16
          %s334 = smul.addr %s333, 64
          %s335 = scalar_lea.hbm %s6, %s334
          %s336 = sshll.u32 %s328, 4
          %s337 = int_to_ptr.vmem [resolvable:$true] %s336
          %342 = dma.hbm_to_vmem [thread:$0]  %s335, 1024, %s337, %s325, 64, 64, 4
        $region40: #{fused_sense_forward.1} parent=15 // pred_fallthru
          _
      $region16: #{fused_sense_forward.1} parent=5 // pred_fallthru
        _
      %p343 = scmp.le.s32.totalorder 1, %s29
      %p344 = scmp.lt.s32.totalorder %s29, 3
      %p345 = pnand %p343, %p344
      %p346 = pneg %p345
      // Predicated region
      $region41: #{fused_sense_forward.1} parent=5 // pred_check
        _
      $region42: #{fused_sense_forward.1} parent=5 // pred_check_branch
        %348 = sbr.rel (%p345) target = $region44
      $region43: #{fused_sense_forward.1} parent=5 // pred_region
        %s349 = ssub.s32 %s29, 1
        %s350 = sand.u32 %s42, 1
        %s351 = scalar_lea.sflag [#allocation5], %s350
        %s352 = sand.u32 %s42, 1
        %s353 = smul.addr %s352, 256
        %s354 = scalar_lea.vmem [#allocation4], %s353
        // Predicated region
        $region45: #{fused_sense_forward.1} parent=43 // pred_check
          %p355 = pneg %p55
        $region46: #{fused_sense_forward.1} parent=43 // pred_check_branch
          %357 = sbr.rel (%p355) target = $region48
        $region47: #{fused_sense_forward.1} parent=43 // pred_region
          %358 = dma.done %s351, 4096
        $region48: #{fused_sense_forward.1} parent=43 // pred_fallthru
          _
        %s359 = sand.u32 %s34, 1
        %s360 = scalar_lea.sflag [#allocation8], %s359
        %s361 = sand.u32 %s70, 1
        %s362 = smul.addr %s361, 64
        %s363 = scalar_lea.vmem [#allocation7], %s362
        // Predicated region
        $region49: #{fused_sense_forward.1} parent=43 // pred_check
          %p364 = pneg %p83
        $region50: #{fused_sense_forward.1} parent=43 // pred_check_branch
          %366 = sbr.rel (%p364) target = $region52
        $region51: #{fused_sense_forward.1} parent=43 // pred_region
          %367 = dma.done %s360, 1024
        $region52: #{fused_sense_forward.1} parent=43 // pred_fallthru
          _
        %s368 = sand.u32 %s34, 1
        %s369 = scalar_lea.sflag [#allocation8], %s368
        %s370 = sand.u32 %s126, 1
        %s371 = smul.addr %s370, 64
        %s372 = scalar_lea.vmem [#allocation9], %s371
        // Predicated region
        $region53: #{fused_sense_forward.1} parent=43 // pred_check
          %p373 = pneg %p139
        $region54: #{fused_sense_forward.1} parent=43 // pred_check_branch
          %375 = sbr.rel (%p373) target = $region56
        $region55: #{fused_sense_forward.1} parent=43 // pred_region
          %376 = dma.done %s369, 1024
        $region56: #{fused_sense_forward.1} parent=43 // pred_fallthru
          _
        %s377 = sand.u32 %s182, 1
        %s378 = scalar_lea.sflag [#allocation11], %s377
        %s379 = sand.u32 %s182, 1
        %s380 = smul.addr %s379, 64
        %s381 = scalar_lea.vmem [#allocation10], %s380
        // Predicated region
        $region57: #{fused_sense_forward.1} parent=43 // pred_check
          %p382 = pneg %p195
        $region58: #{fused_sense_forward.1} parent=43 // pred_check_branch
          %384 = sbr.rel (%p382) target = $region60
        $region59: #{fused_sense_forward.1} parent=43 // pred_region
          %385 = dma.done %s378, 1024
        $region60: #{fused_sense_forward.1} parent=43 // pred_fallthru
          _
        %s386 = sand.u32 %s42, 1
        %s387 = scalar_lea.sflag [#allocation5], %s386
        %s388 = sand.u32 %s42, 1
        %s389 = smul.addr %s388, 256
        %s390 = scalar_lea.vmem [#allocation4], %s389
        %p391 = pneg %p55
        %p392 = pneg %p52
        %s393 = sand.u32 %s34, 1
        %s394 = scalar_lea.sflag [#allocation8], %s393
        %s395 = sand.u32 %s70, 1
        %s396 = smul.addr %s395, 64
        %s397 = scalar_lea.vmem [#allocation7], %s396
        %p398 = pneg %p83
        %p399 = pneg %p80
        %s400 = sld [smem:[#allocation3 + %s34]]
        %p401 = scmp.lt.s32.totalorder %s400, 1
        %s402 = scalar_select %p401, %s400, 1
        %s403 = scalar_lea.vmem %s3, %s402
        %p404 = pneg %p111
        %p405 = pneg %p108
        %s406 = sand.u32 %s34, 1
        %s407 = scalar_lea.sflag [#allocation8], %s406
        %s408 = sand.u32 %s126, 1
        %s409 = smul.addr %s408, 64
        %s410 = scalar_lea.vmem [#allocation9], %s409
        %p411 = pneg %p139
        %p412 = pneg %p136
        %s413 = sld [smem:[#allocation3 + %s34]]
        %p414 = scmp.lt.s32.totalorder %s413, 1
        %s415 = scalar_select %p414, %s413, 1
        %s416 = scalar_lea.vmem %s5, %s415
        %p417 = pneg %p167
        %p418 = pneg %p164
        %s419 = sand.u32 %s182, 1
        %s420 = scalar_lea.sflag [#allocation11], %s419
        %s421 = sand.u32 %s182, 1
        %s422 = smul.addr %s421, 64
        %s423 = scalar_lea.vmem [#allocation10], %s422
        %p424 = pneg %p195
        %p425 = pneg %p192
        %p426 = pneg %p221
        %p427 = pneg %p218
        %s428 = sand.u32 %s208, 1
        %s429 = scalar_lea.sflag [#allocation6], %s428
        %s430 = sand.u32 %s208, 1
        %s431 = smul.addr %s430, 256
        %s432 = scalar_lea.vmem [#allocation12], %s431
        %s433 = smul.u32 64, %s34
        %s434 = sld [smem:[#allocation3 + %s34]]
        %s435 = sld [smem:[#allocation3 + %s34]]
        %p436 = scmp.lt.s32.totalorder %s435, 1
        %s437 = scalar_select %p436, %s435, 1
        %s438 = scalar_lea.vmem %s3, %s437
        %s439 = sld [smem:[#allocation3 + %s34]]
        %s440 = sld [smem:[#allocation3 + %s34]]
        %s441 = sld [smem:[#allocation3 + %s34]]
        %p442 = scmp.lt.s32.totalorder %s441, 1
        %s443 = scalar_select %p442, %s441, 1
        %s444 = scalar_lea.vmem %s5, %s443
        %s445 = sld [smem:[#allocation3 + %s34]]
        %s446 = sld [smem:[#allocation3 + %s34]]
        %s447 = smul.u32 64, %s34
        %v449 = vld [vmem:[%s354] sm:$0xf]
        %v450 = vld [vmem:[%s354 + $0x4] sm:$0xf]
        %v451 = vld [vmem:[%s354 + $0x8] sm:$0xf]
        %v452 = vld [vmem:[%s354 + $0xc] sm:$0xf]
        %v453 = vld [vmem:[%s354 + $0x10] sm:$0xf]
        %v454 = vld [vmem:[%s354 + $0x14] sm:$0xf]
        %v455 = vld [vmem:[%s354 + $0x18] sm:$0xf]
        %v456 = vld [vmem:[%s354 + $0x1c] sm:$0xf]
        %v457 = vld [vmem:[%s354 + $0x20] sm:$0xf]
        %v458 = vld [vmem:[%s354 + $0x24] sm:$0xf]
        %v459 = vld [vmem:[%s354 + $0x28] sm:$0xf]
        %v460 = vld [vmem:[%s354 + $0x2c] sm:$0xf]
        %v461 = vld [vmem:[%s354 + $0x30] sm:$0xf]
        %v462 = vld [vmem:[%s354 + $0x34] sm:$0xf]
        %v463 = vld [vmem:[%s354 + $0x38] sm:$0xf]
        %v464 = vld [vmem:[%s354 + $0x3c] sm:$0xf]
        %v465 = vld [vmem:[%s354 + $0x40] sm:$0xf]
        %v466 = vld [vmem:[%s354 + $0x44] sm:$0xf]
        %v467 = vld [vmem:[%s354 + $0x48] sm:$0xf]
        %v468 = vld [vmem:[%s354 + $0x4c] sm:$0xf]
        %v469 = vld [vmem:[%s354 + $0x50] sm:$0xf]
        %v470 = vld [vmem:[%s354 + $0x54] sm:$0xf]
        %v471 = vld [vmem:[%s354 + $0x58] sm:$0xf]
        %v472 = vld [vmem:[%s354 + $0x5c] sm:$0xf]
        %v473 = vld [vmem:[%s354 + $0x60] sm:$0xf]
        %v474 = vld [vmem:[%s354 + $0x64] sm:$0xf]
        %v475 = vld [vmem:[%s354 + $0x68] sm:$0xf]
        %v476 = vld [vmem:[%s354 + $0x6c] sm:$0xf]
        %v477 = vld [vmem:[%s354 + $0x70] sm:$0xf]
        %v478 = vld [vmem:[%s354 + $0x74] sm:$0xf]
        %v479 = vld [vmem:[%s354 + $0x78] sm:$0xf]
        %v480 = vld [vmem:[%s354 + $0x7c] sm:$0xf]
        %v481 = vld [vmem:[%s354 + $0x80] sm:$0xf]
        %v482 = vld [vmem:[%s354 + $0x84] sm:$0xf]
        %v483 = vld [vmem:[%s354 + $0x88] sm:$0xf]
        %v484 = vld [vmem:[%s354 + $0x8c] sm:$0xf]
        %v485 = vld [vmem:[%s354 + $0x90] sm:$0xf]
        %v486 = vld [vmem:[%s354 + $0x94] sm:$0xf]
        %v487 = vld [vmem:[%s354 + $0x98] sm:$0xf]
        %v488 = vld [vmem:[%s354 + $0x9c] sm:$0xf]
        %v489 = vld [vmem:[%s354 + $0xa0] sm:$0xf]
        %v490 = vld [vmem:[%s354 + $0xa4] sm:$0xf]
        %v491 = vld [vmem:[%s354 + $0xa8] sm:$0xf]
        %v492 = vld [vmem:[%s354 + $0xac] sm:$0xf]
        %v493 = vld [vmem:[%s354 + $0xb0] sm:$0xf]
        %v494 = vld [vmem:[%s354 + $0xb4] sm:$0xf]
        %v495 = vld [vmem:[%s354 + $0xb8] sm:$0xf]
        %v496 = vld [vmem:[%s354 + $0xbc] sm:$0xf]
        %v497 = vld [vmem:[%s354 + $0xc0] sm:$0xf]
        %v498 = vld [vmem:[%s354 + $0xc4] sm:$0xf]
        %v499 = vld [vmem:[%s354 + $0xc8] sm:$0xf]
        %v500 = vld [vmem:[%s354 + $0xcc] sm:$0xf]
        %v501 = vld [vmem:[%s354 + $0xd0] sm:$0xf]
        %v502 = vld [vmem:[%s354 + $0xd4] sm:$0xf]
        %v503 = vld [vmem:[%s354 + $0xd8] sm:$0xf]
        %v504 = vld [vmem:[%s354 + $0xdc] sm:$0xf]
        %v505 = vld [vmem:[%s354 + $0xe0] sm:$0xf]
        %v506 = vld [vmem:[%s354 + $0xe4] sm:$0xf]
        %v507 = vld [vmem:[%s354 + $0xe8] sm:$0xf]
        %v508 = vld [vmem:[%s354 + $0xec] sm:$0xf]
        %v509 = vld [vmem:[%s354 + $0xf0] sm:$0xf]
        %v510 = vld [vmem:[%s354 + $0xf4] sm:$0xf]
        %v511 = vld [vmem:[%s354 + $0xf8] sm:$0xf]
        %v512 = vld [vmem:[%s354 + $0xfc] sm:$0xf]
        %v513 = vld [vmem:[%s363] sm:$0xf]
        %v514 = vld [vmem:[%s363 + $0x4] sm:$0xf]
        %v515 = vld [vmem:[%s363 + $0x8] sm:$0xf]
        %v516 = vld [vmem:[%s363 + $0xc] sm:$0xf]
        %v517 = vld [vmem:[%s363 + $0x10] sm:$0xf]
        %v518 = vld [vmem:[%s363 + $0x14] sm:$0xf]
        %v519 = vld [vmem:[%s363 + $0x18] sm:$0xf]
        %v520 = vld [vmem:[%s363 + $0x1c] sm:$0xf]
        %v521 = vld [vmem:[%s363 + $0x20] sm:$0xf]
        %v522 = vld [vmem:[%s363 + $0x24] sm:$0xf]
        %v523 = vld [vmem:[%s363 + $0x28] sm:$0xf]
        %v524 = vld [vmem:[%s363 + $0x2c] sm:$0xf]
        %v525 = vld [vmem:[%s363 + $0x30] sm:$0xf]
        %v526 = vld [vmem:[%s363 + $0x34] sm:$0xf]
        %v527 = vld [vmem:[%s363 + $0x38] sm:$0xf]
        %v528 = vld [vmem:[%s363 + $0x3c] sm:$0xf]
        %v529 = vld [vmem:[%s438] sm:$0x1]
        %v531 = vlaneseq
        %v532 = vshrl.u32 %v531, 7
        %v533 = vsub.s32 0, %v532
        %v534 = vrot.slane %v529, %v533
        %v600 = vunpack.c.l.b16 %v449
        %v601 = vunpack.c.l.b16 %v450
        %v602 = vunpack.c.l.b16 %v451
        %v603 = vunpack.c.l.b16 %v452
        %v604 = vunpack.c.l.b16 %v453
        %v605 = vunpack.c.l.b16 %v454
        %v606 = vunpack.c.l.b16 %v455
        %v607 = vunpack.c.l.b16 %v456
        %v608 = vunpack.c.l.b16 %v457
        %v609 = vunpack.c.l.b16 %v458
        %v610 = vunpack.c.l.b16 %v459
        %v611 = vunpack.c.l.b16 %v460
        %v612 = vunpack.c.l.b16 %v461
        %v613 = vunpack.c.l.b16 %v462
        %v614 = vunpack.c.l.b16 %v463
        %v615 = vunpack.c.l.b16 %v464
        %v616 = vunpack.c.l.b16 %v465
        %v617 = vunpack.c.l.b16 %v466
        %v618 = vunpack.c.l.b16 %v467
        %v619 = vunpack.c.l.b16 %v468
        %v620 = vunpack.c.l.b16 %v469
        %v621 = vunpack.c.l.b16 %v470
        %v622 = vunpack.c.l.b16 %v471
        %v623 = vunpack.c.l.b16 %v472
        %v624 = vunpack.c.l.b16 %v473
        %v625 = vunpack.c.l.b16 %v474
        %v626 = vunpack.c.l.b16 %v475
        %v627 = vunpack.c.l.b16 %v476
        %v628 = vunpack.c.l.b16 %v477
        %v629 = vunpack.c.l.b16 %v478
        %v630 = vunpack.c.l.b16 %v479
        %v631 = vunpack.c.l.b16 %v480
        %v632 = vunpack.c.l.b16 %v481
        %v633 = vunpack.c.l.b16 %v482
        %v634 = vunpack.c.l.b16 %v483
        %v635 = vunpack.c.l.b16 %v484
        %v636 = vunpack.c.l.b16 %v485
        %v637 = vunpack.c.l.b16 %v486
        %v638 = vunpack.c.l.b16 %v487
        %v639 = vunpack.c.l.b16 %v488
        %v640 = vunpack.c.l.b16 %v489
        %v641 = vunpack.c.l.b16 %v490
        %v642 = vunpack.c.l.b16 %v491
        %v643 = vunpack.c.l.b16 %v492
        %v644 = vunpack.c.l.b16 %v493
        %v645 = vunpack.c.l.b16 %v494
        %v646 = vunpack.c.l.b16 %v495
        %v647 = vunpack.c.l.b16 %v496
        %v648 = vunpack.c.l.b16 %v497
        %v649 = vunpack.c.l.b16 %v498
        %v650 = vunpack.c.l.b16 %v499
        %v651 = vunpack.c.l.b16 %v500
        %v652 = vunpack.c.l.b16 %v501
        %v653 = vunpack.c.l.b16 %v502
        %v654 = vunpack.c.l.b16 %v503
        %v655 = vunpack.c.l.b16 %v504
        %v656 = vunpack.c.l.b16 %v505
        %v657 = vunpack.c.l.b16 %v506
        %v658 = vunpack.c.l.b16 %v507
        %v659 = vunpack.c.l.b16 %v508
        %v660 = vunpack.c.l.b16 %v509
        %v661 = vunpack.c.l.b16 %v510
        %v662 = vunpack.c.l.b16 %v511
        %v663 = vunpack.c.l.b16 %v512
        %v664 = vpack.c.b16 %v601, %v600
        %v665 = vpack.c.b16 %v603, %v602
        %v666 = vpack.c.b16 %v605, %v604
        %v667 = vpack.c.b16 %v607, %v606
        %v668 = vpack.c.b16 %v609, %v608
        %v669 = vpack.c.b16 %v611, %v610
        %v670 = vpack.c.b16 %v613, %v612
        %v671 = vpack.c.b16 %v615, %v614
        %v672 = vpack.c.b16 %v617, %v616
        %v673 = vpack.c.b16 %v619, %v618
        %v674 = vpack.c.b16 %v621, %v620
        %v675 = vpack.c.b16 %v623, %v622
        %v676 = vpack.c.b16 %v625, %v624
        %v677 = vpack.c.b16 %v627, %v626
        %v678 = vpack.c.b16 %v629, %v628
        %v679 = vpack.c.b16 %v631, %v630
        %v680 = vpack.c.b16 %v633, %v632
        %v681 = vpack.c.b16 %v635, %v634
        %v682 = vpack.c.b16 %v637, %v636
        %v683 = vpack.c.b16 %v639, %v638
        %v684 = vpack.c.b16 %v641, %v640
        %v685 = vpack.c.b16 %v643, %v642
        %v686 = vpack.c.b16 %v645, %v644
        %v687 = vpack.c.b16 %v647, %v646
        %v688 = vpack.c.b16 %v649, %v648
        %v689 = vpack.c.b16 %v651, %v650
        %v690 = vpack.c.b16 %v653, %v652
        %v691 = vpack.c.b16 %v655, %v654
        %v692 = vpack.c.b16 %v657, %v656
        %v693 = vpack.c.b16 %v659, %v658
        %v694 = vpack.c.b16 %v661, %v660
        %v695 = vpack.c.b16 %v663, %v662
        %v744 = vunpack.c.l.b16 %v513
        %v745 = vunpack.c.l.b16 %v514
        %v746 = vunpack.c.l.b16 %v515
        %v747 = vunpack.c.l.b16 %v516
        %v748 = vunpack.c.l.b16 %v517
        %v749 = vunpack.c.l.b16 %v518
        %v750 = vunpack.c.l.b16 %v519
        %v751 = vunpack.c.l.b16 %v520
        %v752 = vunpack.c.l.b16 %v521
        %v753 = vunpack.c.l.b16 %v522
        %v754 = vunpack.c.l.b16 %v523
        %v755 = vunpack.c.l.b16 %v524
        %v756 = vunpack.c.l.b16 %v525
        %v757 = vunpack.c.l.b16 %v526
        %v758 = vunpack.c.l.b16 %v527
        %v759 = vunpack.c.l.b16 %v528
        %v760 = vpack.c.b16 %v745, %v744
        %v761 = vpack.c.b16 %v747, %v746
        %v762 = vpack.c.b16 %v749, %v748
        %v763 = vpack.c.b16 %v751, %v750
        %v764 = vpack.c.b16 %v753, %v752
        %v765 = vpack.c.b16 %v755, %v754
        %v766 = vpack.c.b16 %v757, %v756
        %v767 = vpack.c.b16 %v759, %v758
        %776 = vmatprep.subr.bf16.mxu0 0
        %777 = vmatpush1.bf16.msra.mxu0 %v760
        %778 = vmatprep.subr.bf16.mxu0 0
        %779 = vmatpush1.bf16.msra.mxu0 %v761
        %780 = vmatprep.subr.bf16.mxu0 0
        %781 = vmatpush1.bf16.msra.mxu0 %v762
        %782 = vmatprep.subr.bf16.mxu0 0
        %783 = vmatpush1.bf16.msra.mxu0 %v763
        %784 = vmatprep.subr.bf16.mxu0 0
        %785 = vmatpush1.bf16.msra.mxu0 %v764
        %786 = vmatprep.subr.bf16.mxu0 0
        %787 = vmatpush1.bf16.msra.mxu0 %v765
        %788 = vmatprep.subr.bf16.mxu0 0
        %789 = vmatpush1.bf16.msra.mxu0 %v766
        %790 = vmatprep.subr.bf16.mxu0 0
        %791 = vmatpush1.bf16.msra.mxu0 %v767
        %792 = vmatprep.subr.bf16.mxu0 0
        %793 = vmatpush1.bf16.msra.mxu0 0
        %794 = vmatprep.subr.bf16.mxu0 0
        %795 = vmatpush1.bf16.msra.mxu0 0
        %796 = vmatprep.subr.bf16.mxu0 0
        %797 = vmatpush1.bf16.msra.mxu0 0
        %798 = vmatprep.subr.bf16.mxu0 0
        %799 = vmatpush1.bf16.msra.mxu0 0
        %800 = vmatprep.subr.bf16.mxu0 0
        %801 = vmatpush1.bf16.msra.mxu0 0
        %802 = vmatprep.subr.bf16.mxu0 0
        %803 = vmatpush1.bf16.msra.mxu0 0
        %804 = vmatprep.subr.bf16.mxu0 0
        %805 = vmatpush1.bf16.msra.mxu0 0
        %806 = vmatprep.subr.bf16.mxu0 0
        %807 = vmatpush1.bf16.msra.mxu0 0
        %808 = vmatprep.mubr.bf16.mxu0 0
        %809 = vmatmul.mubr.bf16.gmra.mrb[0].mxu0 %v664
        %v810 = vpop.f32.mrb[0].mxu0
        %v811 = vadd.f32 %v534, %v810
        %v812 = vpop.f32.mrb[0].mxu0
        %v813 = vpop.f32.mrb[0].mxu0
        %v814 = vadd.f32 %v534, %v813
        %v815 = vpop.f32.mrb[0].mxu0
        %816 = vmatprep.mubr.bf16.mxu0 0
        %817 = vmatmul.mubr.bf16.gmra.mrb[0].mxu0 %v665
        %v818 = vpop.f32.mrb[0].mxu0
        %v819 = vadd.f32 %v534, %v818
        %v820 = vpop.f32.mrb[0].mxu0
        %v821 = vpop.f32.mrb[0].mxu0
        %v822 = vadd.f32 %v534, %v821
        %v823 = vpop.f32.mrb[0].mxu0
        %824 = vmatprep.mubr.bf16.mxu0 0
        %825 = vmatmul.mubr.bf16.gmra.mrb[0].mxu0 %v666
        %v826 = vpop.f32.mrb[0].mxu0
        %v827 = vadd.f32 %v534, %v826
        %v828 = vpop.f32.mrb[0].mxu0
        %v829 = vpop.f32.mrb[0].mxu0
        %v830 = vadd.f32 %v534, %v829
        %v831 = vpop.f32.mrb[0].mxu0
        %832 = vmatprep.mubr.bf16.mxu0 0
        %833 = vmatmul.mubr.bf16.gmra.mrb[0].mxu0 %v667
        %v834 = vpop.f32.mrb[0].mxu0
        %v835 = vadd.f32 %v534, %v834
        %v836 = vpop.f32.mrb[0].mxu0
        %v837 = vpop.f32.mrb[0].mxu0
        %v838 = vadd.f32 %v534, %v837
        %v839 = vpop.f32.mrb[0].mxu0
        %840 = vmatprep.mubr.bf16.mxu0 0
        %841 = vmatmul.mubr.bf16.gmra.mrb[0].mxu0 %v668
        %v842 = vpop.f32.mrb[0].mxu0
        %v843 = vadd.f32 %v534, %v842
        %v844 = vpop.f32.mrb[0].mxu0
        %v845 = vpop.f32.mrb[0].mxu0
        %v846 = vadd.f32 %v534, %v845
        %v847 = vpop.f32.mrb[0].mxu0
        %848 = vmatprep.mubr.bf16.mxu0 0
        %849 = vmatmul.mubr.bf16.gmra.mrb[0].mxu0 %v669
        %v850 = vpop.f32.mrb[0].mxu0
        %v851 = vadd.f32 %v534, %v850
        %v852 = vpop.f32.mrb[0].mxu0
        %v853 = vpop.f32.mrb[0].mxu0
        %v854 = vadd.f32 %v534, %v853
        %v855 = vpop.f32.mrb[0].mxu0
        %856 = vmatprep.mubr.bf16.mxu0 0
        %857 = vmatmul.mubr.bf16.gmra.mrb[0].mxu0 %v670
        %v858 = vpop.f32.mrb[0].mxu0
        %v859 = vadd.f32 %v534, %v858
        %v860 = vpop.f32.mrb[0].mxu0
        %v861 = vpop.f32.mrb[0].mxu0
        %v862 = vadd.f32 %v534, %v861
        %v863 = vpop.f32.mrb[0].mxu0
        %864 = vmatprep.mubr.bf16.mxu0 0
        %865 = vmatmul.mubr.bf16.gmra.mrb[0].mxu0 %v671
        %v866 = vpop.f32.mrb[0].mxu0
        %v867 = vadd.f32 %v534, %v866
        %v868 = vpop.f32.mrb[0].mxu0
        %v869 = vpop.f32.mrb[0].mxu0
        %v870 = vadd.f32 %v534, %v869
        %v871 = vpop.f32.mrb[0].mxu0
        %872 = vmatprep.mubr.bf16.mxu0 0
        %873 = vmatmul.mubr.bf16.gmra.mrb[0].mxu0 %v672
        %v874 = vpop.f32.mrb[0].mxu0
        %v875 = vadd.f32 %v534, %v874
        %v876 = vpop.f32.mrb[0].mxu0
        %v877 = vpop.f32.mrb[0].mxu0
        %v878 = vadd.f32 %v534, %v877
        %v879 = vpop.f32.mrb[0].mxu0
        %880 = vmatprep.mubr.bf16.mxu0 0
        %881 = vmatmul.mubr.bf16.gmra.mrb[0].mxu0 %v673
        %v882 = vpop.f32.mrb[0].mxu0
        %v883 = vadd.f32 %v534, %v882
        %v884 = vpop.f32.mrb[0].mxu0
        %v885 = vpop.f32.mrb[0].mxu0
        %v886 = vadd.f32 %v534, %v885
        %v887 = vpop.f32.mrb[0].mxu0
        %888 = vmatprep.mubr.bf16.mxu0 0
        %889 = vmatmul.mubr.bf16.gmra.mrb[0].mxu0 %v674
        %v890 = vpop.f32.mrb[0].mxu0
        %v891 = vadd.f32 %v534, %v890
        %v892 = vpop.f32.mrb[0].mxu0
        %v893 = vpop.f32.mrb[0].mxu0
        %v894 = vadd.f32 %v534, %v893
        %v895 = vpop.f32.mrb[0].mxu0
        %896 = vmatprep.mubr.bf16.mxu0 0
        %897 = vmatmul.mubr.bf16.gmra.mrb[0].mxu0 %v675
        %v898 = vpop.f32.mrb[0].mxu0
        %v899 = vadd.f32 %v534, %v898
        %v900 = vpop.f32.mrb[0].mxu0
        %v901 = vpop.f32.mrb[0].mxu0
        %v902 = vadd.f32 %v534, %v901
        %v903 = vpop.f32.mrb[0].mxu0
        %904 = vmatprep.mubr.bf16.mxu0 0
        %905 = vmatmul.mubr.bf16.gmra.mrb[0].mxu0 %v676
        %v906 = vpop.f32.mrb[0].mxu0
        %v907 = vadd.f32 %v534, %v906
        %v908 = vpop.f32.mrb[0].mxu0
        %v909 = vpop.f32.mrb[0].mxu0
        %v910 = vadd.f32 %v534, %v909
        %v911 = vpop.f32.mrb[0].mxu0
        %912 = vmatprep.mubr.bf16.mxu0 0
        %913 = vmatmul.mubr.bf16.gmra.mrb[0].mxu0 %v677
        %v914 = vpop.f32.mrb[0].mxu0
        %v915 = vadd.f32 %v534, %v914
        %v916 = vpop.f32.mrb[0].mxu0
        %v917 = vpop.f32.mrb[0].mxu0
        %v918 = vadd.f32 %v534, %v917
        %v919 = vpop.f32.mrb[0].mxu0
        %920 = vmatprep.mubr.bf16.mxu0 0
        %921 = vmatmul.mubr.bf16.gmra.mrb[0].mxu0 %v678
        %v922 = vpop.f32.mrb[0].mxu0
        %v923 = vadd.f32 %v534, %v922
        %v924 = vpop.f32.mrb[0].mxu0
        %v925 = vpop.f32.mrb[0].mxu0
        %v926 = vadd.f32 %v534, %v925
        %v927 = vpop.f32.mrb[0].mxu0
        %928 = vmatprep.mubr.bf16.mxu0 0
        %929 = vmatmul.mubr.bf16.gmra.mrb[0].mxu0 %v679
        %v930 = vpop.f32.mrb[0].mxu0
        %v931 = vadd.f32 %v534, %v930
        %v932 = vpop.f32.mrb[0].mxu0
        %v933 = vpop.f32.mrb[0].mxu0
        %v934 = vadd.f32 %v534, %v933
        %v935 = vpop.f32.mrb[0].mxu0
        %936 = vmatprep.mubr.bf16.mxu0 0
        %937 = vmatmul.mubr.bf16.gmra.mrb[0].mxu0 %v680
        %v938 = vpop.f32.mrb[0].mxu0
        %v939 = vadd.f32 %v534, %v938
        %v940 = vpop.f32.mrb[0].mxu0
        %v941 = vpop.f32.mrb[0].mxu0
        %v942 = vadd.f32 %v534, %v941
        %v943 = vpop.f32.mrb[0].mxu0
        %944 = vmatprep.mubr.bf16.mxu0 0
        %945 = vmatmul.mubr.bf16.gmra.mrb[0].mxu0 %v681
        %v946 = vpop.f32.mrb[0].mxu0
        %v947 = vadd.f32 %v534, %v946
        %v948 = vpop.f32.mrb[0].mxu0
        %v949 = vpop.f32.mrb[0].mxu0
        %v950 = vadd.f32 %v534, %v949
        %v951 = vpop.f32.mrb[0].mxu0
        %952 = vmatprep.mubr.bf16.mxu0 0
        %953 = vmatmul.mubr.bf16.gmra.mrb[0].mxu0 %v682
        %v954 = vpop.f32.mrb[0].mxu0
        %v955 = vadd.f32 %v534, %v954
        %v956 = vpop.f32.mrb[0].mxu0
        %v957 = vpop.f32.mrb[0].mxu0
        %v958 = vadd.f32 %v534, %v957
        %v959 = vpop.f32.mrb[0].mxu0
        %960 = vmatprep.mubr.bf16.mxu0 0
        %961 = vmatmul.mubr.bf16.gmra.mrb[0].mxu0 %v683
        %v962 = vpop.f32.mrb[0].mxu0
        %v963 = vadd.f32 %v534, %v962
        %v964 = vpop.f32.mrb[0].mxu0
        %v965 = vpop.f32.mrb[0].mxu0
        %v966 = vadd.f32 %v534, %v965
        %v967 = vpop.f32.mrb[0].mxu0
        %968 = vmatprep.mubr.bf16.mxu0 0
        %969 = vmatmul.mubr.bf16.gmra.mrb[0].mxu0 %v684
        %v970 = vpop.f32.mrb[0].mxu0
        %v971 = vadd.f32 %v534, %v970
        %v972 = vpop.f32.mrb[0].mxu0
        %v973 = vpop.f32.mrb[0].mxu0
        %v974 = vadd.f32 %v534, %v973
        %v975 = vpop.f32.mrb[0].mxu0
        %976 = vmatprep.mubr.bf16.mxu0 0
        %977 = vmatmul.mubr.bf16.gmra.mrb[0].mxu0 %v685
        %v978 = vpop.f32.mrb[0].mxu0
        %v979 = vadd.f32 %v534, %v978
        %v980 = vpop.f32.mrb[0].mxu0
        %v981 = vpop.f32.mrb[0].mxu0
        %v982 = vadd.f32 %v534, %v981
        %v983 = vpop.f32.mrb[0].mxu0
        %984 = vmatprep.mubr.bf16.mxu0 0
        %985 = vmatmul.mubr.bf16.gmra.mrb[0].mxu0 %v686
        %v986 = vpop.f32.mrb[0].mxu0
        %v987 = vadd.f32 %v534, %v986
        %v988 = vpop.f32.mrb[0].mxu0
        %v989 = vpop.f32.mrb[0].mxu0
        %v990 = vadd.f32 %v534, %v989
        %v991 = vpop.f32.mrb[0].mxu0
        %992 = vmatprep.mubr.bf16.mxu0 0
        %993 = vmatmul.mubr.bf16.gmra.mrb[0].mxu0 %v687
        %v994 = vpop.f32.mrb[0].mxu0
        %v995 = vadd.f32 %v534, %v994
        %v996 = vpop.f32.mrb[0].mxu0
        %v997 = vpop.f32.mrb[0].mxu0
        %v998 = vadd.f32 %v534, %v997
        %v999 = vpop.f32.mrb[0].mxu0
        %1000 = vmatprep.mubr.bf16.mxu0 0
        %1001 = vmatmul.mubr.bf16.gmra.mrb[0].mxu0 %v688
        %v1002 = vpop.f32.mrb[0].mxu0
        %v1003 = vadd.f32 %v534, %v1002
        %v1004 = vpop.f32.mrb[0].mxu0
        %v1005 = vpop.f32.mrb[0].mxu0
        %v1006 = vadd.f32 %v534, %v1005
        %v1007 = vpop.f32.mrb[0].mxu0
        %1008 = vmatprep.mubr.bf16.mxu0 0
        %1009 = vmatmul.mubr.bf16.gmra.mrb[0].mxu0 %v689
        %v1010 = vpop.f32.mrb[0].mxu0
        %v1011 = vadd.f32 %v534, %v1010
        %v1012 = vpop.f32.mrb[0].mxu0
        %v1013 = vpop.f32.mrb[0].mxu0
        %v1014 = vadd.f32 %v534, %v1013
        %v1015 = vpop.f32.mrb[0].mxu0
        %1016 = vmatprep.mubr.bf16.mxu0 0
        %1017 = vmatmul.mubr.bf16.gmra.mrb[0].mxu0 %v690
        %v1018 = vpop.f32.mrb[0].mxu0
        %v1019 = vadd.f32 %v534, %v1018
        %v1020 = vpop.f32.mrb[0].mxu0
        %v1021 = vpop.f32.mrb[0].mxu0
        %v1022 = vadd.f32 %v534, %v1021
        %v1023 = vpop.f32.mrb[0].mxu0
        %1024 = vmatprep.mubr.bf16.mxu0 0
        %1025 = vmatmul.mubr.bf16.gmra.mrb[0].mxu0 %v691
        %v1026 = vpop.f32.mrb[0].mxu0
        %v1027 = vadd.f32 %v534, %v1026
        %v1028 = vpop.f32.mrb[0].mxu0
        %v1029 = vpop.f32.mrb[0].mxu0
        %v1030 = vadd.f32 %v534, %v1029
        %v1031 = vpop.f32.mrb[0].mxu0
        %1032 = vmatprep.mubr.bf16.mxu0 0
        %1033 = vmatmul.mubr.bf16.gmra.mrb[0].mxu0 %v692
        %v1034 = vpop.f32.mrb[0].mxu0
        %v1035 = vadd.f32 %v534, %v1034
        %v1036 = vpop.f32.mrb[0].mxu0
        %v1037 = vpop.f32.mrb[0].mxu0
        %v1038 = vadd.f32 %v534, %v1037
        %v1039 = vpop.f32.mrb[0].mxu0
        %1040 = vmatprep.mubr.bf16.mxu0 0
        %1041 = vmatmul.mubr.bf16.gmra.mrb[0].mxu0 %v693
        %v1042 = vpop.f32.mrb[0].mxu0
        %v1043 = vadd.f32 %v534, %v1042
        %v1044 = vpop.f32.mrb[0].mxu0
        %v1045 = vpop.f32.mrb[0].mxu0
        %v1046 = vadd.f32 %v534, %v1045
        %v1047 = vpop.f32.mrb[0].mxu0
        %1048 = vmatprep.mubr.bf16.mxu0 0
        %1049 = vmatmul.mubr.bf16.gmra.mrb[0].mxu0 %v694
        %v1050 = vpop.f32.mrb[0].mxu0
        %v1051 = vadd.f32 %v534, %v1050
        %v1052 = vpop.f32.mrb[0].mxu0
        %v1053 = vpop.f32.mrb[0].mxu0
        %v1054 = vadd.f32 %v534, %v1053
        %v1055 = vpop.f32.mrb[0].mxu0
        %1056 = vmatprep.mubr.bf16.mxu0 0
        %1057 = vmatmul.mubr.bf16.gmra.mrb[0].mxu0 %v695
        %v1058 = vpop.f32.mrb[0].mxu0
        %v1059 = vadd.f32 %v534, %v1058
        %v1060 = vpop.f32.mrb[0].mxu0
        %v1061 = vpop.f32.mrb[0].mxu0
        %v1062 = vadd.f32 %v534, %v1061
        %v1063 = vpop.f32.mrb[0].mxu0
        %1064 = vdwg.mxu0
        %v1065 = vmax.f32 %v811, 0.0
        %v1066 = vmax.f32 %v814, 0.0
        %v1067 = vmax.f32 %v819, 0.0
        %v1068 = vmax.f32 %v822, 0.0
        %v1069 = vmax.f32 %v827, 0.0
        %v1070 = vmax.f32 %v830, 0.0
        %v1071 = vmax.f32 %v835, 0.0
        %v1072 = vmax.f32 %v838, 0.0
        %v1073 = vmax.f32 %v843, 0.0
        %v1074 = vmax.f32 %v846, 0.0
        %v1075 = vmax.f32 %v851, 0.0
        %v1076 = vmax.f32 %v854, 0.0
        %v1077 = vmax.f32 %v859, 0.0
        %v1078 = vmax.f32 %v862, 0.0
        %v1079 = vmax.f32 %v867, 0.0
        %v1080 = vmax.f32 %v870, 0.0
        %v1081 = vmax.f32 %v875, 0.0
        %v1082 = vmax.f32 %v878, 0.0
        %v1083 = vmax.f32 %v883, 0.0
        %v1084 = vmax.f32 %v886, 0.0
        %v1085 = vmax.f32 %v891, 0.0
        %v1086 = vmax.f32 %v894, 0.0
        %v1087 = vmax.f32 %v899, 0.0
        %v1088 = vmax.f32 %v902, 0.0
        %v1089 = vmax.f32 %v907, 0.0
        %v1090 = vmax.f32 %v910, 0.0
        %v1091 = vmax.f32 %v915, 0.0
        %v1092 = vmax.f32 %v918, 0.0
        %v1093 = vmax.f32 %v923, 0.0
        %v1094 = vmax.f32 %v926, 0.0
        %v1095 = vmax.f32 %v931, 0.0
        %v1096 = vmax.f32 %v934, 0.0
        %v1097 = vmax.f32 %v939, 0.0
        %v1098 = vmax.f32 %v942, 0.0
        %v1099 = vmax.f32 %v947, 0.0
        %v1100 = vmax.f32 %v950, 0.0
        %v1101 = vmax.f32 %v955, 0.0
        %v1102 = vmax.f32 %v958, 0.0
        %v1103 = vmax.f32 %v963, 0.0
        %v1104 = vmax.f32 %v966, 0.0
        %v1105 = vmax.f32 %v971, 0.0
        %v1106 = vmax.f32 %v974, 0.0
        %v1107 = vmax.f32 %v979, 0.0
        %v1108 = vmax.f32 %v982, 0.0
        %v1109 = vmax.f32 %v987, 0.0
        %v1110 = vmax.f32 %v990, 0.0
        %v1111 = vmax.f32 %v995, 0.0
        %v1112 = vmax.f32 %v998, 0.0
        %v1113 = vmax.f32 %v1003, 0.0
        %v1114 = vmax.f32 %v1006, 0.0
        %v1115 = vmax.f32 %v1011, 0.0
        %v1116 = vmax.f32 %v1014, 0.0
        %v1117 = vmax.f32 %v1019, 0.0
        %v1118 = vmax.f32 %v1022, 0.0
        %v1119 = vmax.f32 %v1027, 0.0
        %v1120 = vmax.f32 %v1030, 0.0
        %v1121 = vmax.f32 %v1035, 0.0
        %v1122 = vmax.f32 %v1038, 0.0
        %v1123 = vmax.f32 %v1043, 0.0
        %v1124 = vmax.f32 %v1046, 0.0
        %v1125 = vmax.f32 %v1051, 0.0
        %v1126 = vmax.f32 %v1054, 0.0
        %v1127 = vmax.f32 %v1059, 0.0
        %v1128 = vmax.f32 %v1062, 0.0
        %v1129 = vpack.c.bf16 %v1066, %v1065
        %v1130 = vpack.c.bf16 %v1068, %v1067
        %v1131 = vpack.c.bf16 %v1070, %v1069
        %v1132 = vpack.c.bf16 %v1072, %v1071
        %v1133 = vpack.c.bf16 %v1074, %v1073
        %v1134 = vpack.c.bf16 %v1076, %v1075
        %v1135 = vpack.c.bf16 %v1078, %v1077
        %v1136 = vpack.c.bf16 %v1080, %v1079
        %v1137 = vpack.c.bf16 %v1082, %v1081
        %v1138 = vpack.c.bf16 %v1084, %v1083
        %v1139 = vpack.c.bf16 %v1086, %v1085
        %v1140 = vpack.c.bf16 %v1088, %v1087
        %v1141 = vpack.c.bf16 %v1090, %v1089
        %v1142 = vpack.c.bf16 %v1092, %v1091
        %v1143 = vpack.c.bf16 %v1094, %v1093
        %v1144 = vpack.c.bf16 %v1096, %v1095
        %v1145 = vpack.c.bf16 %v1098, %v1097
        %v1146 = vpack.c.bf16 %v1100, %v1099
        %v1147 = vpack.c.bf16 %v1102, %v1101
        %v1148 = vpack.c.bf16 %v1104, %v1103
        %v1149 = vpack.c.bf16 %v1106, %v1105
        %v1150 = vpack.c.bf16 %v1108, %v1107
        %v1151 = vpack.c.bf16 %v1110, %v1109
        %v1152 = vpack.c.bf16 %v1112, %v1111
        %v1153 = vpack.c.bf16 %v1114, %v1113
        %v1154 = vpack.c.bf16 %v1116, %v1115
        %v1155 = vpack.c.bf16 %v1118, %v1117
        %v1156 = vpack.c.bf16 %v1120, %v1119
        %v1157 = vpack.c.bf16 %v1122, %v1121
        %v1158 = vpack.c.bf16 %v1124, %v1123
        %v1159 = vpack.c.bf16 %v1126, %v1125
        %v1160 = vpack.c.bf16 %v1128, %v1127
        %v1161 = vld [vmem:[%s372] sm:$0xf]
        %v1162 = vld [vmem:[%s372 + $0x4] sm:$0xf]
        %v1163 = vld [vmem:[%s372 + $0x8] sm:$0xf]
        %v1164 = vld [vmem:[%s372 + $0xc] sm:$0xf]
        %v1165 = vld [vmem:[%s372 + $0x10] sm:$0xf]
        %v1166 = vld [vmem:[%s372 + $0x14] sm:$0xf]
        %v1167 = vld [vmem:[%s372 + $0x18] sm:$0xf]
        %v1168 = vld [vmem:[%s372 + $0x1c] sm:$0xf]
        %v1169 = vld [vmem:[%s372 + $0x20] sm:$0xf]
        %v1170 = vld [vmem:[%s372 + $0x24] sm:$0xf]
        %v1171 = vld [vmem:[%s372 + $0x28] sm:$0xf]
        %v1172 = vld [vmem:[%s372 + $0x2c] sm:$0xf]
        %v1173 = vld [vmem:[%s372 + $0x30] sm:$0xf]
        %v1174 = vld [vmem:[%s372 + $0x34] sm:$0xf]
        %v1175 = vld [vmem:[%s372 + $0x38] sm:$0xf]
        %v1176 = vld [vmem:[%s372 + $0x3c] sm:$0xf]
        %v1177 = vld [vmem:[%s444] sm:$0x1]
        %v1179 = vlaneseq
        %v1180 = vshrl.u32 %v1179, 7
        %v1181 = vsub.s32 0, %v1180
        %v1182 = vrot.slane %v1177, %v1181
        %v1200 = vunpack.c.l.b16 %v1161
        %v1201 = vunpack.c.l.b16 %v1162
        %v1202 = vunpack.c.l.b16 %v1163
        %v1203 = vunpack.c.l.b16 %v1164
        %v1204 = vunpack.c.l.b16 %v1165
        %v1205 = vunpack.c.l.b16 %v1166
        %v1206 = vunpack.c.l.b16 %v1167
        %v1207 = vunpack.c.l.b16 %v1168
        %v1208 = vunpack.c.l.b16 %v1169
        %v1209 = vunpack.c.l.b16 %v1170
        %v1210 = vunpack.c.l.b16 %v1171
        %v1211 = vunpack.c.l.b16 %v1172
        %v1212 = vunpack.c.l.b16 %v1173
        %v1213 = vunpack.c.l.b16 %v1174
        %v1214 = vunpack.c.l.b16 %v1175
        %v1215 = vunpack.c.l.b16 %v1176
        %v1216 = vpack.c.b16 %v1201, %v1200
        %v1217 = vpack.c.b16 %v1203, %v1202
        %v1218 = vpack.c.b16 %v1205, %v1204
        %v1219 = vpack.c.b16 %v1207, %v1206
        %v1220 = vpack.c.b16 %v1209, %v1208
        %v1221 = vpack.c.b16 %v1211, %v1210
        %v1222 = vpack.c.b16 %v1213, %v1212
        %v1223 = vpack.c.b16 %v1215, %v1214
        %1232 = vmatprep.subr.bf16.mxu0 0
        %1233 = vmatpush1.bf16.msra.mxu0 %v1216
        %1234 = vmatprep.subr.bf16.mxu0 0
        %1235 = vmatpush1.bf16.msra.mxu0 %v1217
        %1236 = vmatprep.subr.bf16.mxu0 0
        %1237 = vmatpush1.bf16.msra.mxu0 %v1218
        %1238 = vmatprep.subr.bf16.mxu0 0
        %1239 = vmatpush1.bf16.msra.mxu0 %v1219
        %1240 = vmatprep.subr.bf16.mxu0 0
        %1241 = vmatpush1.bf16.msra.mxu0 %v1220
        %1242 = vmatprep.subr.bf16.mxu0 0
        %1243 = vmatpush1.bf16.msra.mxu0 %v1221
        %1244 = vmatprep.subr.bf16.mxu0 0
        %1245 = vmatpush1.bf16.msra.mxu0 %v1222
        %1246 = vmatprep.subr.bf16.mxu0 0
        %1247 = vmatpush1.bf16.msra.mxu0 %v1223
        %1248 = vmatprep.subr.bf16.mxu0 0
        %1249 = vmatpush1.bf16.msra.mxu0 0
        %1250 = vmatprep.subr.bf16.mxu0 0
        %1251 = vmatpush1.bf16.msra.mxu0 0
        %1252 = vmatprep.subr.bf16.mxu0 0
        %1253 = vmatpush1.bf16.msra.mxu0 0
        %1254 = vmatprep.subr.bf16.mxu0 0
        %1255 = vmatpush1.bf16.msra.mxu0 0
        %1256 = vmatprep.subr.bf16.mxu0 0
        %1257 = vmatpush1.bf16.msra.mxu0 0
        %1258 = vmatprep.subr.bf16.mxu0 0
        %1259 = vmatpush1.bf16.msra.mxu0 0
        %1260 = vmatprep.subr.bf16.mxu0 0
        %1261 = vmatpush1.bf16.msra.mxu0 0
        %1262 = vmatprep.subr.bf16.mxu0 0
        %1263 = vmatpush1.bf16.msra.mxu0 0
        %1264 = vmatprep.mubr.bf16.mxu0 0
        %1265 = vmatmul.mubr.bf16.gmra.mrb[0].mxu0 %v1129
        %v1266 = vpop.f32.mrb[0].mxu0
        %v1267 = vadd.f32 %v1182, %v1266
        %v1268 = vpop.f32.mrb[0].mxu0
        %v1269 = vpop.f32.mrb[0].mxu0
        %v1270 = vadd.f32 %v1182, %v1269
        %v1271 = vpop.f32.mrb[0].mxu0
        %1272 = vmatprep.mubr.bf16.mxu0 0
        %1273 = vmatmul.mubr.bf16.gmra.mrb[0].mxu0 %v1130
        %v1274 = vpop.f32.mrb[0].mxu0
        %v1275 = vadd.f32 %v1182, %v1274
        %v1276 = vpop.f32.mrb[0].mxu0
        %v1277 = vpop.f32.mrb[0].mxu0
        %v1278 = vadd.f32 %v1182, %v1277
        %v1279 = vpop.f32.mrb[0].mxu0
        %1280 = vmatprep.mubr.bf16.mxu0 0
        %1281 = vmatmul.mubr.bf16.gmra.mrb[0].mxu0 %v1131
        %v1282 = vpop.f32.mrb[0].mxu0
        %v1283 = vadd.f32 %v1182, %v1282
        %v1284 = vpop.f32.mrb[0].mxu0
        %v1285 = vpop.f32.mrb[0].mxu0
        %v1286 = vadd.f32 %v1182, %v1285
        %v1287 = vpop.f32.mrb[0].mxu0
        %1288 = vmatprep.mubr.bf16.mxu0 0
        %1289 = vmatmul.mubr.bf16.gmra.mrb[0].mxu0 %v1132
        %v1290 = vpop.f32.mrb[0].mxu0
        %v1291 = vadd.f32 %v1182, %v1290
        %v1292 = vpop.f32.mrb[0].mxu0
        %v1293 = vpop.f32.mrb[0].mxu0
        %v1294 = vadd.f32 %v1182, %v1293
        %v1295 = vpop.f32.mrb[0].mxu0
        %1296 = vmatprep.mubr.bf16.mxu0 0
        %1297 = vmatmul.mubr.bf16.gmra.mrb[0].mxu0 %v1133
        %v1298 = vpop.f32.mrb[0].mxu0
        %v1299 = vadd.f32 %v1182, %v1298
        %v1300 = vpop.f32.mrb[0].mxu0
        %v1301 = vpop.f32.mrb[0].mxu0
        %v1302 = vadd.f32 %v1182, %v1301
        %v1303 = vpop.f32.mrb[0].mxu0
        %1304 = vmatprep.mubr.bf16.mxu0 0
        %1305 = vmatmul.mubr.bf16.gmra.mrb[0].mxu0 %v1134
        %v1306 = vpop.f32.mrb[0].mxu0
        %v1307 = vadd.f32 %v1182, %v1306
        %v1308 = vpop.f32.mrb[0].mxu0
        %v1309 = vpop.f32.mrb[0].mxu0
        %v1310 = vadd.f32 %v1182, %v1309
        %v1311 = vpop.f32.mrb[0].mxu0
        %1312 = vmatprep.mubr.bf16.mxu0 0
        %1313 = vmatmul.mubr.bf16.gmra.mrb[0].mxu0 %v1135
        %v1314 = vpop.f32.mrb[0].mxu0
        %v1315 = vadd.f32 %v1182, %v1314
        %v1316 = vpop.f32.mrb[0].mxu0
        %v1317 = vpop.f32.mrb[0].mxu0
        %v1318 = vadd.f32 %v1182, %v1317
        %v1319 = vpop.f32.mrb[0].mxu0
        %1320 = vmatprep.mubr.bf16.mxu0 0
        %1321 = vmatmul.mubr.bf16.gmra.mrb[0].mxu0 %v1136
        %v1322 = vpop.f32.mrb[0].mxu0
        %v1323 = vadd.f32 %v1182, %v1322
        %v1324 = vpop.f32.mrb[0].mxu0
        %v1325 = vpop.f32.mrb[0].mxu0
        %v1326 = vadd.f32 %v1182, %v1325
        %v1327 = vpop.f32.mrb[0].mxu0
        %1328 = vmatprep.mubr.bf16.mxu0 0
        %1329 = vmatmul.mubr.bf16.gmra.mrb[0].mxu0 %v1137
        %v1330 = vpop.f32.mrb[0].mxu0
        %v1331 = vadd.f32 %v1182, %v1330
        %v1332 = vpop.f32.mrb[0].mxu0
        %v1333 = vpop.f32.mrb[0].mxu0
        %v1334 = vadd.f32 %v1182, %v1333
        %v1335 = vpop.f32.mrb[0].mxu0
        %1336 = vmatprep.mubr.bf16.mxu0 0
        %1337 = vmatmul.mubr.bf16.gmra.mrb[0].mxu0 %v1138
        %v1338 = vpop.f32.mrb[0].mxu0
        %v1339 = vadd.f32 %v1182, %v1338
        %v1340 = vpop.f32.mrb[0].mxu0
        %v1341 = vpop.f32.mrb[0].mxu0
        %v1342 = vadd.f32 %v1182, %v1341
        %v1343 = vpop.f32.mrb[0].mxu0
        %1344 = vmatprep.mubr.bf16.mxu0 0
        %1345 = vmatmul.mubr.bf16.gmra.mrb[0].mxu0 %v1139
        %v1346 = vpop.f32.mrb[0].mxu0
        %v1347 = vadd.f32 %v1182, %v1346
        %v1348 = vpop.f32.mrb[0].mxu0
        %v1349 = vpop.f32.mrb[0].mxu0
        %v1350 = vadd.f32 %v1182, %v1349
        %v1351 = vpop.f32.mrb[0].mxu0
        %1352 = vmatprep.mubr.bf16.mxu0 0
        %1353 = vmatmul.mubr.bf16.gmra.mrb[0].mxu0 %v1140
        %v1354 = vpop.f32.mrb[0].mxu0
        %v1355 = vadd.f32 %v1182, %v1354
        %v1356 = vpop.f32.mrb[0].mxu0
        %v1357 = vpop.f32.mrb[0].mxu0
        %v1358 = vadd.f32 %v1182, %v1357
        %v1359 = vpop.f32.mrb[0].mxu0
        %1360 = vmatprep.mubr.bf16.mxu0 0
        %1361 = vmatmul.mubr.bf16.gmra.mrb[0].mxu0 %v1141
        %v1362 = vpop.f32.mrb[0].mxu0
        %v1363 = vadd.f32 %v1182, %v1362
        %v1364 = vpop.f32.mrb[0].mxu0
        %v1365 = vpop.f32.mrb[0].mxu0
        %v1366 = vadd.f32 %v1182, %v1365
        %v1367 = vpop.f32.mrb[0].mxu0
        %1368 = vmatprep.mubr.bf16.mxu0 0
        %1369 = vmatmul.mubr.bf16.gmra.mrb[0].mxu0 %v1142
        %v1370 = vpop.f32.mrb[0].mxu0
        %v1371 = vadd.f32 %v1182, %v1370
        %v1372 = vpop.f32.mrb[0].mxu0
        %v1373 = vpop.f32.mrb[0].mxu0
        %v1374 = vadd.f32 %v1182, %v1373
        %v1375 = vpop.f32.mrb[0].mxu0
        %1376 = vmatprep.mubr.bf16.mxu0 0
        %1377 = vmatmul.mubr.bf16.gmra.mrb[0].mxu0 %v1143
        %v1378 = vpop.f32.mrb[0].mxu0
        %v1379 = vadd.f32 %v1182, %v1378
        %v1380 = vpop.f32.mrb[0].mxu0
        %v1381 = vpop.f32.mrb[0].mxu0
        %v1382 = vadd.f32 %v1182, %v1381
        %v1383 = vpop.f32.mrb[0].mxu0
        %1384 = vmatprep.mubr.bf16.mxu0 0
        %1385 = vmatmul.mubr.bf16.gmra.mrb[0].mxu0 %v1144
        %v1386 = vpop.f32.mrb[0].mxu0
        %v1387 = vadd.f32 %v1182, %v1386
        %v1388 = vpop.f32.mrb[0].mxu0
        %v1389 = vpop.f32.mrb[0].mxu0
        %v1390 = vadd.f32 %v1182, %v1389
        %v1391 = vpop.f32.mrb[0].mxu0
        %1392 = vmatprep.mubr.bf16.mxu0 0
        %1393 = vmatmul.mubr.bf16.gmra.mrb[0].mxu0 %v1145
        %v1394 = vpop.f32.mrb[0].mxu0
        %v1395 = vadd.f32 %v1182, %v1394
        %v1396 = vpop.f32.mrb[0].mxu0
        %v1397 = vpop.f32.mrb[0].mxu0
        %v1398 = vadd.f32 %v1182, %v1397
        %v1399 = vpop.f32.mrb[0].mxu0
        %1400 = vmatprep.mubr.bf16.mxu0 0
        %1401 = vmatmul.mubr.bf16.gmra.mrb[0].mxu0 %v1146
        %v1402 = vpop.f32.mrb[0].mxu0
        %v1403 = vadd.f32 %v1182, %v1402
        %v1404 = vpop.f32.mrb[0].mxu0
        %v1405 = vpop.f32.mrb[0].mxu0
        %v1406 = vadd.f32 %v1182, %v1405
        %v1407 = vpop.f32.mrb[0].mxu0
        %1408 = vmatprep.mubr.bf16.mxu0 0
        %1409 = vmatmul.mubr.bf16.gmra.mrb[0].mxu0 %v1147
        %v1410 = vpop.f32.mrb[0].mxu0
        %v1411 = vadd.f32 %v1182, %v1410
        %v1412 = vpop.f32.mrb[0].mxu0
        %v1413 = vpop.f32.mrb[0].mxu0
        %v1414 = vadd.f32 %v1182, %v1413
        %v1415 = vpop.f32.mrb[0].mxu0
        %1416 = vmatprep.mubr.bf16.mxu0 0
        %1417 = vmatmul.mubr.bf16.gmra.mrb[0].mxu0 %v1148
        %v1418 = vpop.f32.mrb[0].mxu0
        %v1419 = vadd.f32 %v1182, %v1418
        %v1420 = vpop.f32.mrb[0].mxu0
        %v1421 = vpop.f32.mrb[0].mxu0
        %v1422 = vadd.f32 %v1182, %v1421
        %v1423 = vpop.f32.mrb[0].mxu0
        %1424 = vmatprep.mubr.bf16.mxu0 0
        %1425 = vmatmul.mubr.bf16.gmra.mrb[0].mxu0 %v1149
        %v1426 = vpop.f32.mrb[0].mxu0
        %v1427 = vadd.f32 %v1182, %v1426
        %v1428 = vpop.f32.mrb[0].mxu0
        %v1429 = vpop.f32.mrb[0].mxu0
        %v1430 = vadd.f32 %v1182, %v1429
        %v1431 = vpop.f32.mrb[0].mxu0
        %1432 = vmatprep.mubr.bf16.mxu0 0
        %1433 = vmatmul.mubr.bf16.gmra.mrb[0].mxu0 %v1150
        %v1434 = vpop.f32.mrb[0].mxu0
        %v1435 = vadd.f32 %v1182, %v1434
        %v1436 = vpop.f32.mrb[0].mxu0
        %v1437 = vpop.f32.mrb[0].mxu0
        %v1438 = vadd.f32 %v1182, %v1437
        %v1439 = vpop.f32.mrb[0].mxu0
        %1440 = vmatprep.mubr.bf16.mxu0 0
        %1441 = vmatmul.mubr.bf16.gmra.mrb[0].mxu0 %v1151
        %v1442 = vpop.f32.mrb[0].mxu0
        %v1443 = vadd.f32 %v1182, %v1442
        %v1444 = vpop.f32.mrb[0].mxu0
        %v1445 = vpop.f32.mrb[0].mxu0
        %v1446 = vadd.f32 %v1182, %v1445
        %v1447 = vpop.f32.mrb[0].mxu0
        %1448 = vmatprep.mubr.bf16.mxu0 0
        %1449 = vmatmul.mubr.bf16.gmra.mrb[0].mxu0 %v1152
        %v1450 = vpop.f32.mrb[0].mxu0
        %v1451 = vadd.f32 %v1182, %v1450
        %v1452 = vpop.f32.mrb[0].mxu0
        %v1453 = vpop.f32.mrb[0].mxu0
        %v1454 = vadd.f32 %v1182, %v1453
        %v1455 = vpop.f32.mrb[0].mxu0
        %1456 = vmatprep.mubr.bf16.mxu0 0
        %1457 = vmatmul.mubr.bf16.gmra.mrb[0].mxu0 %v1153
        %v1458 = vpop.f32.mrb[0].mxu0
        %v1459 = vadd.f32 %v1182, %v1458
        %v1460 = vpop.f32.mrb[0].mxu0
        %v1461 = vpop.f32.mrb[0].mxu0
        %v1462 = vadd.f32 %v1182, %v1461
        %v1463 = vpop.f32.mrb[0].mxu0
        %1464 = vmatprep.mubr.bf16.mxu0 0
        %1465 = vmatmul.mubr.bf16.gmra.mrb[0].mxu0 %v1154
        %v1466 = vpop.f32.mrb[0].mxu0
        %v1467 = vadd.f32 %v1182, %v1466
        %v1468 = vpop.f32.mrb[0].mxu0
        %v1469 = vpop.f32.mrb[0].mxu0
        %v1470 = vadd.f32 %v1182, %v1469
        %v1471 = vpop.f32.mrb[0].mxu0
        %1472 = vmatprep.mubr.bf16.mxu0 0
        %1473 = vmatmul.mubr.bf16.gmra.mrb[0].mxu0 %v1155
        %v1474 = vpop.f32.mrb[0].mxu0
        %v1475 = vadd.f32 %v1182, %v1474
        %v1476 = vpop.f32.mrb[0].mxu0
        %v1477 = vpop.f32.mrb[0].mxu0
        %v1478 = vadd.f32 %v1182, %v1477
        %v1479 = vpop.f32.mrb[0].mxu0
        %1480 = vmatprep.mubr.bf16.mxu0 0
        %1481 = vmatmul.mubr.bf16.gmra.mrb[0].mxu0 %v1156
        %v1482 = vpop.f32.mrb[0].mxu0
        %v1483 = vadd.f32 %v1182, %v1482
        %v1484 = vpop.f32.mrb[0].mxu0
        %v1485 = vpop.f32.mrb[0].mxu0
        %v1486 = vadd.f32 %v1182, %v1485
        %v1487 = vpop.f32.mrb[0].mxu0
        %1488 = vmatprep.mubr.bf16.mxu0 0
        %1489 = vmatmul.mubr.bf16.gmra.mrb[0].mxu0 %v1157
        %v1490 = vpop.f32.mrb[0].mxu0
        %v1491 = vadd.f32 %v1182, %v1490
        %v1492 = vpop.f32.mrb[0].mxu0
        %v1493 = vpop.f32.mrb[0].mxu0
        %v1494 = vadd.f32 %v1182, %v1493
        %v1495 = vpop.f32.mrb[0].mxu0
        %1496 = vmatprep.mubr.bf16.mxu0 0
        %1497 = vmatmul.mubr.bf16.gmra.mrb[0].mxu0 %v1158
        %v1498 = vpop.f32.mrb[0].mxu0
        %v1499 = vadd.f32 %v1182, %v1498
        %v1500 = vpop.f32.mrb[0].mxu0
        %v1501 = vpop.f32.mrb[0].mxu0
        %v1502 = vadd.f32 %v1182, %v1501
        %v1503 = vpop.f32.mrb[0].mxu0
        %1504 = vmatprep.mubr.bf16.mxu0 0
        %1505 = vmatmul.mubr.bf16.gmra.mrb[0].mxu0 %v1159
        %v1506 = vpop.f32.mrb[0].mxu0
        %v1507 = vadd.f32 %v1182, %v1506
        %v1508 = vpop.f32.mrb[0].mxu0
        %v1509 = vpop.f32.mrb[0].mxu0
        %v1510 = vadd.f32 %v1182, %v1509
        %v1511 = vpop.f32.mrb[0].mxu0
        %1512 = vmatprep.mubr.bf16.mxu0 0
        %1513 = vmatmul.mubr.bf16.gmra.mrb[0].mxu0 %v1160
        %v1514 = vpop.f32.mrb[0].mxu0
        %v1515 = vadd.f32 %v1182, %v1514
        %v1516 = vpop.f32.mrb[0].mxu0
        %v1517 = vpop.f32.mrb[0].mxu0
        %v1518 = vadd.f32 %v1182, %v1517
        %v1519 = vpop.f32.mrb[0].mxu0
        %1520 = vdwg.mxu0
        %1521 = vmax.xlane.f32.xlu0 %v1267
        %v1522 = vpop.xlane.xlu0 %1521
        %1523 = vmax.xlane.f32.xlu0 %v1270
        %v1524 = vpop.xlane.xlu0 %1523
        %1525 = vmax.xlane.f32.xlu0 %v1275
        %v1526 = vpop.xlane.xlu0 %1525
        %1527 = vmax.xlane.f32.xlu0 %v1278
        %v1528 = vpop.xlane.xlu0 %1527
        %1529 = vmax.xlane.f32.xlu0 %v1283
        %v1530 = vpop.xlane.xlu0 %1529
        %1531 = vmax.xlane.f32.xlu0 %v1286
        %v1532 = vpop.xlane.xlu0 %1531
        %1533 = vmax.xlane.f32.xlu0 %v1291
        %v1534 = vpop.xlane.xlu0 %1533
        %1535 = vmax.xlane.f32.xlu0 %v1294
        %v1536 = vpop.xlane.xlu0 %1535
        %1537 = vmax.xlane.f32.xlu0 %v1299
        %v1538 = vpop.xlane.xlu0 %1537
        %1539 = vmax.xlane.f32.xlu0 %v1302
        %v1540 = vpop.xlane.xlu0 %1539
        %1541 = vmax.xlane.f32.xlu0 %v1307
        %v1542 = vpop.xlane.xlu0 %1541
        %1543 = vmax.xlane.f32.xlu0 %v1310
        %v1544 = vpop.xlane.xlu0 %1543
        %1545 = vmax.xlane.f32.xlu0 %v1315
        %v1546 = vpop.xlane.xlu0 %1545
        %1547 = vmax.xlane.f32.xlu0 %v1318
        %v1548 = vpop.xlane.xlu0 %1547
        %1549 = vmax.xlane.f32.xlu0 %v1323
        %v1550 = vpop.xlane.xlu0 %1549
        %1551 = vmax.xlane.f32.xlu0 %v1326
        %v1552 = vpop.xlane.xlu0 %1551
        %1553 = vmax.xlane.f32.xlu0 %v1331
        %v1554 = vpop.xlane.xlu0 %1553
        %1555 = vmax.xlane.f32.xlu0 %v1334
        %v1556 = vpop.xlane.xlu0 %1555
        %1557 = vmax.xlane.f32.xlu0 %v1339
        %v1558 = vpop.xlane.xlu0 %1557
        %1559 = vmax.xlane.f32.xlu0 %v1342
        %v1560 = vpop.xlane.xlu0 %1559
        %1561 = vmax.xlane.f32.xlu0 %v1347
        %v1562 = vpop.xlane.xlu0 %1561
        %1563 = vmax.xlane.f32.xlu0 %v1350
        %v1564 = vpop.xlane.xlu0 %1563
        %1565 = vmax.xlane.f32.xlu0 %v1355
        %v1566 = vpop.xlane.xlu0 %1565
        %1567 = vmax.xlane.f32.xlu0 %v1358
        %v1568 = vpop.xlane.xlu0 %1567
        %1569 = vmax.xlane.f32.xlu0 %v1363
        %v1570 = vpop.xlane.xlu0 %1569
        %1571 = vmax.xlane.f32.xlu0 %v1366
        %v1572 = vpop.xlane.xlu0 %1571
        %1573 = vmax.xlane.f32.xlu0 %v1371
        %v1574 = vpop.xlane.xlu0 %1573
        %1575 = vmax.xlane.f32.xlu0 %v1374
        %v1576 = vpop.xlane.xlu0 %1575
        %1577 = vmax.xlane.f32.xlu0 %v1379
        %v1578 = vpop.xlane.xlu0 %1577
        %1579 = vmax.xlane.f32.xlu0 %v1382
        %v1580 = vpop.xlane.xlu0 %1579
        %1581 = vmax.xlane.f32.xlu0 %v1387
        %v1582 = vpop.xlane.xlu0 %1581
        %1583 = vmax.xlane.f32.xlu0 %v1390
        %v1584 = vpop.xlane.xlu0 %1583
        %1585 = vmax.xlane.f32.xlu0 %v1395
        %v1586 = vpop.xlane.xlu0 %1585
        %1587 = vmax.xlane.f32.xlu0 %v1398
        %v1588 = vpop.xlane.xlu0 %1587
        %1589 = vmax.xlane.f32.xlu0 %v1403
        %v1590 = vpop.xlane.xlu0 %1589
        %1591 = vmax.xlane.f32.xlu0 %v1406
        %v1592 = vpop.xlane.xlu0 %1591
        %1593 = vmax.xlane.f32.xlu0 %v1411
        %v1594 = vpop.xlane.xlu0 %1593
        %1595 = vmax.xlane.f32.xlu0 %v1414
        %v1596 = vpop.xlane.xlu0 %1595
        %1597 = vmax.xlane.f32.xlu0 %v1419
        %v1598 = vpop.xlane.xlu0 %1597
        %1599 = vmax.xlane.f32.xlu0 %v1422
        %v1600 = vpop.xlane.xlu0 %1599
        %1601 = vmax.xlane.f32.xlu0 %v1427
        %v1602 = vpop.xlane.xlu0 %1601
        %1603 = vmax.xlane.f32.xlu0 %v1430
        %v1604 = vpop.xlane.xlu0 %1603
        %1605 = vmax.xlane.f32.xlu0 %v1435
        %v1606 = vpop.xlane.xlu0 %1605
        %1607 = vmax.xlane.f32.xlu0 %v1438
        %v1608 = vpop.xlane.xlu0 %1607
        %1609 = vmax.xlane.f32.xlu0 %v1443
        %v1610 = vpop.xlane.xlu0 %1609
        %1611 = vmax.xlane.f32.xlu0 %v1446
        %v1612 = vpop.xlane.xlu0 %1611
        %1613 = vmax.xlane.f32.xlu0 %v1451
        %v1614 = vpop.xlane.xlu0 %1613
        %1615 = vmax.xlane.f32.xlu0 %v1454
        %v1616 = vpop.xlane.xlu0 %1615
        %1617 = vmax.xlane.f32.xlu0 %v1459
        %v1618 = vpop.xlane.xlu0 %1617
        %1619 = vmax.xlane.f32.xlu0 %v1462
        %v1620 = vpop.xlane.xlu0 %1619
        %1621 = vmax.xlane.f32.xlu0 %v1467
        %v1622 = vpop.xlane.xlu0 %1621
        %1623 = vmax.xlane.f32.xlu0 %v1470
        %v1624 = vpop.xlane.xlu0 %1623
        %1625 = vmax.xlane.f32.xlu0 %v1475
        %v1626 = vpop.xlane.xlu0 %1625
        %1627 = vmax.xlane.f32.xlu0 %v1478
        %v1628 = vpop.xlane.xlu0 %1627
        %1629 = vmax.xlane.f32.xlu0 %v1483
        %v1630 = vpop.xlane.xlu0 %1629
        %1631 = vmax.xlane.f32.xlu0 %v1486
        %v1632 = vpop.xlane.xlu0 %1631
        %1633 = vmax.xlane.f32.xlu0 %v1491
        %v1634 = vpop.xlane.xlu0 %1633
        %1635 = vmax.xlane.f32.xlu0 %v1494
        %v1636 = vpop.xlane.xlu0 %1635
        %1637 = vmax.xlane.f32.xlu0 %v1499
        %v1638 = vpop.xlane.xlu0 %1637
        %1639 = vmax.xlane.f32.xlu0 %v1502
        %v1640 = vpop.xlane.xlu0 %1639
        %1641 = vmax.xlane.f32.xlu0 %v1507
        %v1642 = vpop.xlane.xlu0 %1641
        %1643 = vmax.xlane.f32.xlu0 %v1510
        %v1644 = vpop.xlane.xlu0 %1643
        %1645 = vmax.xlane.f32.xlu0 %v1515
        %v1646 = vpop.xlane.xlu0 %1645
        %1647 = vmax.xlane.f32.xlu0 %v1518
        %v1648 = vpop.xlane.xlu0 %1647
        %v1649 = vsub.f32 %v1267, %v1522
        %v1650 = vsub.f32 %v1270, %v1524
        %v1651 = vsub.f32 %v1275, %v1526
        %v1652 = vsub.f32 %v1278, %v1528
        %v1653 = vsub.f32 %v1283, %v1530
        %v1654 = vsub.f32 %v1286, %v1532
        %v1655 = vsub.f32 %v1291, %v1534
        %v1656 = vsub.f32 %v1294, %v1536
        %v1657 = vsub.f32 %v1299, %v1538
        %v1658 = vsub.f32 %v1302, %v1540
        %v1659 = vsub.f32 %v1307, %v1542
        %v1660 = vsub.f32 %v1310, %v1544
        %v1661 = vsub.f32 %v1315, %v1546
        %v1662 = vsub.f32 %v1318, %v1548
        %v1663 = vsub.f32 %v1323, %v1550
        %v1664 = vsub.f32 %v1326, %v1552
        %v1665 = vsub.f32 %v1331, %v1554
        %v1666 = vsub.f32 %v1334, %v1556
        %v1667 = vsub.f32 %v1339, %v1558
        %v1668 = vsub.f32 %v1342, %v1560
        %v1669 = vsub.f32 %v1347, %v1562
        %v1670 = vsub.f32 %v1350, %v1564
        %v1671 = vsub.f32 %v1355, %v1566
        %v1672 = vsub.f32 %v1358, %v1568
        %v1673 = vsub.f32 %v1363, %v1570
        %v1674 = vsub.f32 %v1366, %v1572
        %v1675 = vsub.f32 %v1371, %v1574
        %v1676 = vsub.f32 %v1374, %v1576
        %v1677 = vsub.f32 %v1379, %v1578
        %v1678 = vsub.f32 %v1382, %v1580
        %v1679 = vsub.f32 %v1387, %v1582
        %v1680 = vsub.f32 %v1390, %v1584
        %v1681 = vsub.f32 %v1395, %v1586
        %v1682 = vsub.f32 %v1398, %v1588
        %v1683 = vsub.f32 %v1403, %v1590
        %v1684 = vsub.f32 %v1406, %v1592
        %v1685 = vsub.f32 %v1411, %v1594
        %v1686 = vsub.f32 %v1414, %v1596
        %v1687 = vsub.f32 %v1419, %v1598
        %v1688 = vsub.f32 %v1422, %v1600
        %v1689 = vsub.f32 %v1427, %v1602
        %v1690 = vsub.f32 %v1430, %v1604
        %v1691 = vsub.f32 %v1435, %v1606
        %v1692 = vsub.f32 %v1438, %v1608
        %v1693 = vsub.f32 %v1443, %v1610
        %v1694 = vsub.f32 %v1446, %v1612
        %v1695 = vsub.f32 %v1451, %v1614
        %v1696 = vsub.f32 %v1454, %v1616
        %v1697 = vsub.f32 %v1459, %v1618
        %v1698 = vsub.f32 %v1462, %v1620
        %v1699 = vsub.f32 %v1467, %v1622
        %v1700 = vsub.f32 %v1470, %v1624
        %v1701 = vsub.f32 %v1475, %v1626
        %v1702 = vsub.f32 %v1478, %v1628
        %v1703 = vsub.f32 %v1483, %v1630
        %v1704 = vsub.f32 %v1486, %v1632
        %v1705 = vsub.f32 %v1491, %v1634
        %v1706 = vsub.f32 %v1494, %v1636
        %v1707 = vsub.f32 %v1499, %v1638
        %v1708 = vsub.f32 %v1502, %v1640
        %v1709 = vsub.f32 %v1507, %v1642
        %v1710 = vsub.f32 %v1510, %v1644
        %v1711 = vsub.f32 %v1515, %v1646
        %v1712 = vsub.f32 %v1518, %v1648
        %v1713 = vmul.f32 %v1649, 1.442695
        %v1714 = vpow.pop %v1713
        %v1715 = vmul.f32 %v1650, 1.442695
        %v1716 = vpow.pop %v1715
        %v1717 = vmul.f32 %v1651, 1.442695
        %v1718 = vpow.pop %v1717
        %v1719 = vmul.f32 %v1652, 1.442695
        %v1720 = vpow.pop %v1719
        %v1721 = vmul.f32 %v1653, 1.442695
        %v1722 = vpow.pop %v1721
        %v1723 = vmul.f32 %v1654, 1.442695
        %v1724 = vpow.pop %v1723
        %v1725 = vmul.f32 %v1655, 1.442695
        %v1726 = vpow.pop %v1725
        %v1727 = vmul.f32 %v1656, 1.442695
        %v1728 = vpow.pop %v1727
        %v1729 = vmul.f32 %v1657, 1.442695
        %v1730 = vpow.pop %v1729
        %v1731 = vmul.f32 %v1658, 1.442695
        %v1732 = vpow.pop %v1731
        %v1733 = vmul.f32 %v1659, 1.442695
        %v1734 = vpow.pop %v1733
        %v1735 = vmul.f32 %v1660, 1.442695
        %v1736 = vpow.pop %v1735
        %v1737 = vmul.f32 %v1661, 1.442695
        %v1738 = vpow.pop %v1737
        %v1739 = vmul.f32 %v1662, 1.442695
        %v1740 = vpow.pop %v1739
        %v1741 = vmul.f32 %v1663, 1.442695
        %v1742 = vpow.pop %v1741
        %v1743 = vmul.f32 %v1664, 1.442695
        %v1744 = vpow.pop %v1743
        %v1745 = vmul.f32 %v1665, 1.442695
        %v1746 = vpow.pop %v1745
        %v1747 = vmul.f32 %v1666, 1.442695
        %v1748 = vpow.pop %v1747
        %v1749 = vmul.f32 %v1667, 1.442695
        %v1750 = vpow.pop %v1749
        %v1751 = vmul.f32 %v1668, 1.442695
        %v1752 = vpow.pop %v1751
        %v1753 = vmul.f32 %v1669, 1.442695
        %v1754 = vpow.pop %v1753
        %v1755 = vmul.f32 %v1670, 1.442695
        %v1756 = vpow.pop %v1755
        %v1757 = vmul.f32 %v1671, 1.442695
        %v1758 = vpow.pop %v1757
        %v1759 = vmul.f32 %v1672, 1.442695
        %v1760 = vpow.pop %v1759
        %v1761 = vmul.f32 %v1673, 1.442695
        %v1762 = vpow.pop %v1761
        %v1763 = vmul.f32 %v1674, 1.442695
        %v1764 = vpow.pop %v1763
        %v1765 = vmul.f32 %v1675, 1.442695
        %v1766 = vpow.pop %v1765
        %v1767 = vmul.f32 %v1676, 1.442695
        %v1768 = vpow.pop %v1767
        %v1769 = vmul.f32 %v1677, 1.442695
        %v1770 = vpow.pop %v1769
        %v1771 = vmul.f32 %v1678, 1.442695
        %v1772 = vpow.pop %v1771
        %v1773 = vmul.f32 %v1679, 1.442695
        %v1774 = vpow.pop %v1773
        %v1775 = vmul.f32 %v1680, 1.442695
        %v1776 = vpow.pop %v1775
        %v1777 = vmul.f32 %v1681, 1.442695
        %v1778 = vpow.pop %v1777
        %v1779 = vmul.f32 %v1682, 1.442695
        %v1780 = vpow.pop %v1779
        %v1781 = vmul.f32 %v1683, 1.442695
        %v1782 = vpow.pop %v1781
        %v1783 = vmul.f32 %v1684, 1.442695
        %v1784 = vpow.pop %v1783
        %v1785 = vmul.f32 %v1685, 1.442695
        %v1786 = vpow.pop %v1785
        %v1787 = vmul.f32 %v1686, 1.442695
        %v1788 = vpow.pop %v1787
        %v1789 = vmul.f32 %v1687, 1.442695
        %v1790 = vpow.pop %v1789
        %v1791 = vmul.f32 %v1688, 1.442695
        %v1792 = vpow.pop %v1791
        %v1793 = vmul.f32 %v1689, 1.442695
        %v1794 = vpow.pop %v1793
        %v1795 = vmul.f32 %v1690, 1.442695
        %v1796 = vpow.pop %v1795
        %v1797 = vmul.f32 %v1691, 1.442695
        %v1798 = vpow.pop %v1797
        %v1799 = vmul.f32 %v1692, 1.442695
        %v1800 = vpow.pop %v1799
        %v1801 = vmul.f32 %v1693, 1.442695
        %v1802 = vpow.pop %v1801
        %v1803 = vmul.f32 %v1694, 1.442695
        %v1804 = vpow.pop %v1803
        %v1805 = vmul.f32 %v1695, 1.442695
        %v1806 = vpow.pop %v1805
        %v1807 = vmul.f32 %v1696, 1.442695
        %v1808 = vpow.pop %v1807
        %v1809 = vmul.f32 %v1697, 1.442695
        %v1810 = vpow.pop %v1809
        %v1811 = vmul.f32 %v1698, 1.442695
        %v1812 = vpow.pop %v1811
        %v1813 = vmul.f32 %v1699, 1.442695
        %v1814 = vpow.pop %v1813
        %v1815 = vmul.f32 %v1700, 1.442695
        %v1816 = vpow.pop %v1815
        %v1817 = vmul.f32 %v1701, 1.442695
        %v1818 = vpow.pop %v1817
        %v1819 = vmul.f32 %v1702, 1.442695
        %v1820 = vpow.pop %v1819
        %v1821 = vmul.f32 %v1703, 1.442695
        %v1822 = vpow.pop %v1821
        %v1823 = vmul.f32 %v1704, 1.442695
        %v1824 = vpow.pop %v1823
        %v1825 = vmul.f32 %v1705, 1.442695
        %v1826 = vpow.pop %v1825
        %v1827 = vmul.f32 %v1706, 1.442695
        %v1828 = vpow.pop %v1827
        %v1829 = vmul.f32 %v1707, 1.442695
        %v1830 = vpow.pop %v1829
        %v1831 = vmul.f32 %v1708, 1.442695
        %v1832 = vpow.pop %v1831
        %v1833 = vmul.f32 %v1709, 1.442695
        %v1834 = vpow.pop %v1833
        %v1835 = vmul.f32 %v1710, 1.442695
        %v1836 = vpow.pop %v1835
        %v1837 = vmul.f32 %v1711, 1.442695
        %v1838 = vpow.pop %v1837
        %v1839 = vmul.f32 %v1712, 1.442695
        %v1840 = vpow.pop %v1839
        %1841 = vadd.xlane.f32.xlu0 %v1714
        %v1842 = vpop.xlane.xlu0 %1841
        %1843 = vadd.xlane.f32.xlu0 %v1716
        %v1844 = vpop.xlane.xlu0 %1843
        %1845 = vadd.xlane.f32.xlu0 %v1718
        %v1846 = vpop.xlane.xlu0 %1845
        %1847 = vadd.xlane.f32.xlu0 %v1720
        %v1848 = vpop.xlane.xlu0 %1847
        %1849 = vadd.xlane.f32.xlu0 %v1722
        %v1850 = vpop.xlane.xlu0 %1849
        %1851 = vadd.xlane.f32.xlu0 %v1724
        %v1852 = vpop.xlane.xlu0 %1851
        %1853 = vadd.xlane.f32.xlu0 %v1726
        %v1854 = vpop.xlane.xlu0 %1853
        %1855 = vadd.xlane.f32.xlu0 %v1728
        %v1856 = vpop.xlane.xlu0 %1855
        %1857 = vadd.xlane.f32.xlu0 %v1730
        %v1858 = vpop.xlane.xlu0 %1857
        %1859 = vadd.xlane.f32.xlu0 %v1732
        %v1860 = vpop.xlane.xlu0 %1859
        %1861 = vadd.xlane.f32.xlu0 %v1734
        %v1862 = vpop.xlane.xlu0 %1861
        %1863 = vadd.xlane.f32.xlu0 %v1736
        %v1864 = vpop.xlane.xlu0 %1863
        %1865 = vadd.xlane.f32.xlu0 %v1738
        %v1866 = vpop.xlane.xlu0 %1865
        %1867 = vadd.xlane.f32.xlu0 %v1740
        %v1868 = vpop.xlane.xlu0 %1867
        %1869 = vadd.xlane.f32.xlu0 %v1742
        %v1870 = vpop.xlane.xlu0 %1869
        %1871 = vadd.xlane.f32.xlu0 %v1744
        %v1872 = vpop.xlane.xlu0 %1871
        %1873 = vadd.xlane.f32.xlu0 %v1746
        %v1874 = vpop.xlane.xlu0 %1873
        %1875 = vadd.xlane.f32.xlu0 %v1748
        %v1876 = vpop.xlane.xlu0 %1875
        %1877 = vadd.xlane.f32.xlu0 %v1750
        %v1878 = vpop.xlane.xlu0 %1877
        %1879 = vadd.xlane.f32.xlu0 %v1752
        %v1880 = vpop.xlane.xlu0 %1879
        %1881 = vadd.xlane.f32.xlu0 %v1754
        %v1882 = vpop.xlane.xlu0 %1881
        %1883 = vadd.xlane.f32.xlu0 %v1756
        %v1884 = vpop.xlane.xlu0 %1883
        %1885 = vadd.xlane.f32.xlu0 %v1758
        %v1886 = vpop.xlane.xlu0 %1885
        %1887 = vadd.xlane.f32.xlu0 %v1760
        %v1888 = vpop.xlane.xlu0 %1887
        %1889 = vadd.xlane.f32.xlu0 %v1762
        %v1890 = vpop.xlane.xlu0 %1889
        %1891 = vadd.xlane.f32.xlu0 %v1764
        %v1892 = vpop.xlane.xlu0 %1891
        %1893 = vadd.xlane.f32.xlu0 %v1766
        %v1894 = vpop.xlane.xlu0 %1893
        %1895 = vadd.xlane.f32.xlu0 %v1768
        %v1896 = vpop.xlane.xlu0 %1895
        %1897 = vadd.xlane.f32.xlu0 %v1770
        %v1898 = vpop.xlane.xlu0 %1897
        %1899 = vadd.xlane.f32.xlu0 %v1772
        %v1900 = vpop.xlane.xlu0 %1899
        %1901 = vadd.xlane.f32.xlu0 %v1774
        %v1902 = vpop.xlane.xlu0 %1901
        %1903 = vadd.xlane.f32.xlu0 %v1776
        %v1904 = vpop.xlane.xlu0 %1903
        %1905 = vadd.xlane.f32.xlu0 %v1778
        %v1906 = vpop.xlane.xlu0 %1905
        %1907 = vadd.xlane.f32.xlu0 %v1780
        %v1908 = vpop.xlane.xlu0 %1907
        %1909 = vadd.xlane.f32.xlu0 %v1782
        %v1910 = vpop.xlane.xlu0 %1909
        %1911 = vadd.xlane.f32.xlu0 %v1784
        %v1912 = vpop.xlane.xlu0 %1911
        %1913 = vadd.xlane.f32.xlu0 %v1786
        %v1914 = vpop.xlane.xlu0 %1913
        %1915 = vadd.xlane.f32.xlu0 %v1788
        %v1916 = vpop.xlane.xlu0 %1915
        %1917 = vadd.xlane.f32.xlu0 %v1790
        %v1918 = vpop.xlane.xlu0 %1917
        %1919 = vadd.xlane.f32.xlu0 %v1792
        %v1920 = vpop.xlane.xlu0 %1919
        %1921 = vadd.xlane.f32.xlu0 %v1794
        %v1922 = vpop.xlane.xlu0 %1921
        %1923 = vadd.xlane.f32.xlu0 %v1796
        %v1924 = vpop.xlane.xlu0 %1923
        %1925 = vadd.xlane.f32.xlu0 %v1798
        %v1926 = vpop.xlane.xlu0 %1925
        %1927 = vadd.xlane.f32.xlu0 %v1800
        %v1928 = vpop.xlane.xlu0 %1927
        %1929 = vadd.xlane.f32.xlu0 %v1802
        %v1930 = vpop.xlane.xlu0 %1929
        %1931 = vadd.xlane.f32.xlu0 %v1804
        %v1932 = vpop.xlane.xlu0 %1931
        %1933 = vadd.xlane.f32.xlu0 %v1806
        %v1934 = vpop.xlane.xlu0 %1933
        %1935 = vadd.xlane.f32.xlu0 %v1808
        %v1936 = vpop.xlane.xlu0 %1935
        %1937 = vadd.xlane.f32.xlu0 %v1810
        %v1938 = vpop.xlane.xlu0 %1937
        %1939 = vadd.xlane.f32.xlu0 %v1812
        %v1940 = vpop.xlane.xlu0 %1939
        %1941 = vadd.xlane.f32.xlu0 %v1814
        %v1942 = vpop.xlane.xlu0 %1941
        %1943 = vadd.xlane.f32.xlu0 %v1816
        %v1944 = vpop.xlane.xlu0 %1943
        %1945 = vadd.xlane.f32.xlu0 %v1818
        %v1946 = vpop.xlane.xlu0 %1945
        %1947 = vadd.xlane.f32.xlu0 %v1820
        %v1948 = vpop.xlane.xlu0 %1947
        %1949 = vadd.xlane.f32.xlu0 %v1822
        %v1950 = vpop.xlane.xlu0 %1949
        %1951 = vadd.xlane.f32.xlu0 %v1824
        %v1952 = vpop.xlane.xlu0 %1951
        %1953 = vadd.xlane.f32.xlu0 %v1826
        %v1954 = vpop.xlane.xlu0 %1953
        %1955 = vadd.xlane.f32.xlu0 %v1828
        %v1956 = vpop.xlane.xlu0 %1955
        %1957 = vadd.xlane.f32.xlu0 %v1830
        %v1958 = vpop.xlane.xlu0 %1957
        %1959 = vadd.xlane.f32.xlu0 %v1832
        %v1960 = vpop.xlane.xlu0 %1959
        %1961 = vadd.xlane.f32.xlu0 %v1834
        %v1962 = vpop.xlane.xlu0 %1961
        %1963 = vadd.xlane.f32.xlu0 %v1836
        %v1964 = vpop.xlane.xlu0 %1963
        %1965 = vadd.xlane.f32.xlu0 %v1838
        %v1966 = vpop.xlane.xlu0 %1965
        %1967 = vadd.xlane.f32.xlu0 %v1840
        %v1968 = vpop.xlane.xlu0 %1967
        %v1969 = vrcp.pop %v1842
        %v1970 = vrcp.pop %v1844
        %v1971 = vrcp.pop %v1846
        %v1972 = vrcp.pop %v1848
        %v1973 = vrcp.pop %v1850
        %v1974 = vrcp.pop %v1852
        %v1975 = vrcp.pop %v1854
        %v1976 = vrcp.pop %v1856
        %v1977 = vrcp.pop %v1858
        %v1978 = vrcp.pop %v1860
        %v1979 = vrcp.pop %v1862
        %v1980 = vrcp.pop %v1864
        %v1981 = vrcp.pop %v1866
        %v1982 = vrcp.pop %v1868
        %v1983 = vrcp.pop %v1870
        %v1984 = vrcp.pop %v1872
        %v1985 = vrcp.pop %v1874
        %v1986 = vrcp.pop %v1876
        %v1987 = vrcp.pop %v1878
        %v1988 = vrcp.pop %v1880
        %v1989 = vrcp.pop %v1882
        %v1990 = vrcp.pop %v1884
        %v1991 = vrcp.pop %v1886
        %v1992 = vrcp.pop %v1888
        %v1993 = vrcp.pop %v1890
        %v1994 = vrcp.pop %v1892
        %v1995 = vrcp.pop %v1894
        %v1996 = vrcp.pop %v1896
        %v1997 = vrcp.pop %v1898
        %v1998 = vrcp.pop %v1900
        %v1999 = vrcp.pop %v1902
        %v2000 = vrcp.pop %v1904
        %v2001 = vrcp.pop %v1906
        %v2002 = vrcp.pop %v1908
        %v2003 = vrcp.pop %v1910
        %v2004 = vrcp.pop %v1912
        %v2005 = vrcp.pop %v1914
        %v2006 = vrcp.pop %v1916
        %v2007 = vrcp.pop %v1918
        %v2008 = vrcp.pop %v1920
        %v2009 = vrcp.pop %v1922
        %v2010 = vrcp.pop %v1924
        %v2011 = vrcp.pop %v1926
        %v2012 = vrcp.pop %v1928
        %v2013 = vrcp.pop %v1930
        %v2014 = vrcp.pop %v1932
        %v2015 = vrcp.pop %v1934
        %v2016 = vrcp.pop %v1936
        %v2017 = vrcp.pop %v1938
        %v2018 = vrcp.pop %v1940
        %v2019 = vrcp.pop %v1942
        %v2020 = vrcp.pop %v1944
        %v2021 = vrcp.pop %v1946
        %v2022 = vrcp.pop %v1948
        %v2023 = vrcp.pop %v1950
        %v2024 = vrcp.pop %v1952
        %v2025 = vrcp.pop %v1954
        %v2026 = vrcp.pop %v1956
        %v2027 = vrcp.pop %v1958
        %v2028 = vrcp.pop %v1960
        %v2029 = vrcp.pop %v1962
        %v2030 = vrcp.pop %v1964
        %v2031 = vrcp.pop %v1966
        %v2032 = vrcp.pop %v1968
        %v2033 = vmul.f32 %v1714, %v1969
        %v2034 = vmul.f32 %v1716, %v1970
        %v2035 = vmul.f32 %v1718, %v1971
        %v2036 = vmul.f32 %v1720, %v1972
        %v2037 = vmul.f32 %v1722, %v1973
        %v2038 = vmul.f32 %v1724, %v1974
        %v2039 = vmul.f32 %v1726, %v1975
        %v2040 = vmul.f32 %v1728, %v1976
        %v2041 = vmul.f32 %v1730, %v1977
        %v2042 = vmul.f32 %v1732, %v1978
        %v2043 = vmul.f32 %v1734, %v1979
        %v2044 = vmul.f32 %v1736, %v1980
        %v2045 = vmul.f32 %v1738, %v1981
        %v2046 = vmul.f32 %v1740, %v1982
        %v2047 = vmul.f32 %v1742, %v1983
        %v2048 = vmul.f32 %v1744, %v1984
        %v2049 = vmul.f32 %v1746, %v1985
        %v2050 = vmul.f32 %v1748, %v1986
        %v2051 = vmul.f32 %v1750, %v1987
        %v2052 = vmul.f32 %v1752, %v1988
        %v2053 = vmul.f32 %v1754, %v1989
        %v2054 = vmul.f32 %v1756, %v1990
        %v2055 = vmul.f32 %v1758, %v1991
        %v2056 = vmul.f32 %v1760, %v1992
        %v2057 = vmul.f32 %v1762, %v1993
        %v2058 = vmul.f32 %v1764, %v1994
        %v2059 = vmul.f32 %v1766, %v1995
        %v2060 = vmul.f32 %v1768, %v1996
        %v2061 = vmul.f32 %v1770, %v1997
        %v2062 = vmul.f32 %v1772, %v1998
        %v2063 = vmul.f32 %v1774, %v1999
        %v2064 = vmul.f32 %v1776, %v2000
        %v2065 = vmul.f32 %v1778, %v2001
        %v2066 = vmul.f32 %v1780, %v2002
        %v2067 = vmul.f32 %v1782, %v2003
        %v2068 = vmul.f32 %v1784, %v2004
        %v2069 = vmul.f32 %v1786, %v2005
        %v2070 = vmul.f32 %v1788, %v2006
        %v2071 = vmul.f32 %v1790, %v2007
        %v2072 = vmul.f32 %v1792, %v2008
        %v2073 = vmul.f32 %v1794, %v2009
        %v2074 = vmul.f32 %v1796, %v2010
        %v2075 = vmul.f32 %v1798, %v2011
        %v2076 = vmul.f32 %v1800, %v2012
        %v2077 = vmul.f32 %v1802, %v2013
        %v2078 = vmul.f32 %v1804, %v2014
        %v2079 = vmul.f32 %v1806, %v2015
        %v2080 = vmul.f32 %v1808, %v2016
        %v2081 = vmul.f32 %v1810, %v2017
        %v2082 = vmul.f32 %v1812, %v2018
        %v2083 = vmul.f32 %v1814, %v2019
        %v2084 = vmul.f32 %v1816, %v2020
        %v2085 = vmul.f32 %v1818, %v2021
        %v2086 = vmul.f32 %v1820, %v2022
        %v2087 = vmul.f32 %v1822, %v2023
        %v2088 = vmul.f32 %v1824, %v2024
        %v2089 = vmul.f32 %v1826, %v2025
        %v2090 = vmul.f32 %v1828, %v2026
        %v2091 = vmul.f32 %v1830, %v2027
        %v2092 = vmul.f32 %v1832, %v2028
        %v2093 = vmul.f32 %v1834, %v2029
        %v2094 = vmul.f32 %v1836, %v2030
        %v2095 = vmul.f32 %v1838, %v2031
        %v2096 = vmul.f32 %v1840, %v2032
        %v2097 = vpack.c.bf16 %v2034, %v2033
        %v2098 = vpack.c.bf16 %v2036, %v2035
        %v2099 = vpack.c.bf16 %v2038, %v2037
        %v2100 = vpack.c.bf16 %v2040, %v2039
        %v2101 = vpack.c.bf16 %v2042, %v2041
        %v2102 = vpack.c.bf16 %v2044, %v2043
        %v2103 = vpack.c.bf16 %v2046, %v2045
        %v2104 = vpack.c.bf16 %v2048, %v2047
        %v2105 = vpack.c.bf16 %v2050, %v2049
        %v2106 = vpack.c.bf16 %v2052, %v2051
        %v2107 = vpack.c.bf16 %v2054, %v2053
        %v2108 = vpack.c.bf16 %v2056, %v2055
        %v2109 = vpack.c.bf16 %v2058, %v2057
        %v2110 = vpack.c.bf16 %v2060, %v2059
        %v2111 = vpack.c.bf16 %v2062, %v2061
        %v2112 = vpack.c.bf16 %v2064, %v2063
        %v2113 = vpack.c.bf16 %v2066, %v2065
        %v2114 = vpack.c.bf16 %v2068, %v2067
        %v2115 = vpack.c.bf16 %v2070, %v2069
        %v2116 = vpack.c.bf16 %v2072, %v2071
        %v2117 = vpack.c.bf16 %v2074, %v2073
        %v2118 = vpack.c.bf16 %v2076, %v2075
        %v2119 = vpack.c.bf16 %v2078, %v2077
        %v2120 = vpack.c.bf16 %v2080, %v2079
        %v2121 = vpack.c.bf16 %v2082, %v2081
        %v2122 = vpack.c.bf16 %v2084, %v2083
        %v2123 = vpack.c.bf16 %v2086, %v2085
        %v2124 = vpack.c.bf16 %v2088, %v2087
        %v2125 = vpack.c.bf16 %v2090, %v2089
        %v2126 = vpack.c.bf16 %v2092, %v2091
        %v2127 = vpack.c.bf16 %v2094, %v2093
        %v2128 = vpack.c.bf16 %v2096, %v2095
        %v2129 = vld [vmem:[%s381] sm:$0xf]
        %v2130 = vld [vmem:[%s381 + $0x4] sm:$0xf]
        %v2131 = vld [vmem:[%s381 + $0x8] sm:$0xf]
        %v2132 = vld [vmem:[%s381 + $0xc] sm:$0xf]
        %v2133 = vld [vmem:[%s381 + $0x10] sm:$0xf]
        %v2134 = vld [vmem:[%s381 + $0x14] sm:$0xf]
        %v2135 = vld [vmem:[%s381 + $0x18] sm:$0xf]
        %v2136 = vld [vmem:[%s381 + $0x1c] sm:$0xf]
        %v2137 = vld [vmem:[%s381 + $0x20] sm:$0xf]
        %v2138 = vld [vmem:[%s381 + $0x24] sm:$0xf]
        %v2139 = vld [vmem:[%s381 + $0x28] sm:$0xf]
        %v2140 = vld [vmem:[%s381 + $0x2c] sm:$0xf]
        %v2141 = vld [vmem:[%s381 + $0x30] sm:$0xf]
        %v2142 = vld [vmem:[%s381 + $0x34] sm:$0xf]
        %v2143 = vld [vmem:[%s381 + $0x38] sm:$0xf]
        %v2144 = vld [vmem:[%s381 + $0x3c] sm:$0xf]
        %v2161 = vunpack.c.l.b16 %v2129
        %v2162 = vunpack.c.l.b16 %v2130
        %v2163 = vunpack.c.l.b16 %v2131
        %v2164 = vunpack.c.l.b16 %v2132
        %v2165 = vunpack.c.l.b16 %v2133
        %v2166 = vunpack.c.l.b16 %v2134
        %v2167 = vunpack.c.l.b16 %v2135
        %v2168 = vunpack.c.l.b16 %v2136
        %v2169 = vunpack.c.l.b16 %v2137
        %v2170 = vunpack.c.l.b16 %v2138
        %v2171 = vunpack.c.l.b16 %v2139
        %v2172 = vunpack.c.l.b16 %v2140
        %v2173 = vunpack.c.l.b16 %v2141
        %v2174 = vunpack.c.l.b16 %v2142
        %v2175 = vunpack.c.l.b16 %v2143
        %v2176 = vunpack.c.l.b16 %v2144
        %v2177 = vpack.c.b16 %v2162, %v2161
        %v2178 = vpack.c.b16 %v2164, %v2163
        %v2179 = vpack.c.b16 %v2166, %v2165
        %v2180 = vpack.c.b16 %v2168, %v2167
        %v2181 = vpack.c.b16 %v2170, %v2169
        %v2182 = vpack.c.b16 %v2172, %v2171
        %v2183 = vpack.c.b16 %v2174, %v2173
        %v2184 = vpack.c.b16 %v2176, %v2175
        %2193 = vmatprep.subr.bf16.mxu0 0
        %2194 = vmatpush1.bf16.msra.mxu0 %v2177
        %2195 = vmatprep.subr.bf16.mxu0 0
        %2196 = vmatpush1.bf16.msra.mxu0 %v2178
        %2197 = vmatprep.subr.bf16.mxu0 0
        %2198 = vmatpush1.bf16.msra.mxu0 %v2179
        %2199 = vmatprep.subr.bf16.mxu0 0
        %2200 = vmatpush1.bf16.msra.mxu0 %v2180
        %2201 = vmatprep.subr.bf16.mxu0 0
        %2202 = vmatpush1.bf16.msra.mxu0 %v2181
        %2203 = vmatprep.subr.bf16.mxu0 0
        %2204 = vmatpush1.bf16.msra.mxu0 %v2182
        %2205 = vmatprep.subr.bf16.mxu0 0
        %2206 = vmatpush1.bf16.msra.mxu0 %v2183
        %2207 = vmatprep.subr.bf16.mxu0 0
        %2208 = vmatpush1.bf16.msra.mxu0 %v2184
        %2209 = vmatprep.subr.bf16.mxu0 0
        %2210 = vmatpush1.bf16.msra.mxu0 0
        %2211 = vmatprep.subr.bf16.mxu0 0
        %2212 = vmatpush1.bf16.msra.mxu0 0
        %2213 = vmatprep.subr.bf16.mxu0 0
        %2214 = vmatpush1.bf16.msra.mxu0 0
        %2215 = vmatprep.subr.bf16.mxu0 0
        %2216 = vmatpush1.bf16.msra.mxu0 0
        %2217 = vmatprep.subr.bf16.mxu0 0
        %2218 = vmatpush1.bf16.msra.mxu0 0
        %2219 = vmatprep.subr.bf16.mxu0 0
        %2220 = vmatpush1.bf16.msra.mxu0 0
        %2221 = vmatprep.subr.bf16.mxu0 0
        %2222 = vmatpush1.bf16.msra.mxu0 0
        %2223 = vmatprep.subr.bf16.mxu0 0
        %2224 = vmatpush1.bf16.msra.mxu0 0
        %2225 = vmatprep.mubr.bf16.mxu0 0
        %2226 = vmatmul.mubr.bf16.gmra.mrb[0].mxu0 %v2097
        %v2227 = vpop.f32.mrb[0].mxu0
        %v2228 = vadd.f32 0.0, %v2227
        %v2229 = vpop.f32.mrb[0].mxu0
        %v2230 = vpop.f32.mrb[0].mxu0
        %v2231 = vadd.f32 0.0, %v2230
        %v2232 = vpop.f32.mrb[0].mxu0
        %2233 = vmatprep.mubr.bf16.mxu0 0
        %2234 = vmatmul.mubr.bf16.gmra.mrb[0].mxu0 %v2098
        %v2235 = vpop.f32.mrb[0].mxu0
        %v2236 = vadd.f32 0.0, %v2235
        %v2237 = vpop.f32.mrb[0].mxu0
        %v2238 = vpop.f32.mrb[0].mxu0
        %v2239 = vadd.f32 0.0, %v2238
        %v2240 = vpop.f32.mrb[0].mxu0
        %2241 = vmatprep.mubr.bf16.mxu0 0
        %2242 = vmatmul.mubr.bf16.gmra.mrb[0].mxu0 %v2099
        %v2243 = vpop.f32.mrb[0].mxu0
        %v2244 = vadd.f32 0.0, %v2243
        %v2245 = vpop.f32.mrb[0].mxu0
        %v2246 = vpop.f32.mrb[0].mxu0
        %v2247 = vadd.f32 0.0, %v2246
        %v2248 = vpop.f32.mrb[0].mxu0
        %2249 = vmatprep.mubr.bf16.mxu0 0
        %2250 = vmatmul.mubr.bf16.gmra.mrb[0].mxu0 %v2100
        %v2251 = vpop.f32.mrb[0].mxu0
        %v2252 = vadd.f32 0.0, %v2251
        %v2253 = vpop.f32.mrb[0].mxu0
        %v2254 = vpop.f32.mrb[0].mxu0
        %v2255 = vadd.f32 0.0, %v2254
        %v2256 = vpop.f32.mrb[0].mxu0
        %2257 = vmatprep.mubr.bf16.mxu0 0
        %2258 = vmatmul.mubr.bf16.gmra.mrb[0].mxu0 %v2101
        %v2259 = vpop.f32.mrb[0].mxu0
        %v2260 = vadd.f32 0.0, %v2259
        %v2261 = vpop.f32.mrb[0].mxu0
        %v2262 = vpop.f32.mrb[0].mxu0
        %v2263 = vadd.f32 0.0, %v2262
        %v2264 = vpop.f32.mrb[0].mxu0
        %2265 = vmatprep.mubr.bf16.mxu0 0
        %2266 = vmatmul.mubr.bf16.gmra.mrb[0].mxu0 %v2102
        %v2267 = vpop.f32.mrb[0].mxu0
        %v2268 = vadd.f32 0.0, %v2267
        %v2269 = vpop.f32.mrb[0].mxu0
        %v2270 = vpop.f32.mrb[0].mxu0
        %v2271 = vadd.f32 0.0, %v2270
        %v2272 = vpop.f32.mrb[0].mxu0
        %2273 = vmatprep.mubr.bf16.mxu0 0
        %2274 = vmatmul.mubr.bf16.gmra.mrb[0].mxu0 %v2103
        %v2275 = vpop.f32.mrb[0].mxu0
        %v2276 = vadd.f32 0.0, %v2275
        %v2277 = vpop.f32.mrb[0].mxu0
        %v2278 = vpop.f32.mrb[0].mxu0
        %v2279 = vadd.f32 0.0, %v2278
        %v2280 = vpop.f32.mrb[0].mxu0
        %2281 = vmatprep.mubr.bf16.mxu0 0
        %2282 = vmatmul.mubr.bf16.gmra.mrb[0].mxu0 %v2104
        %v2283 = vpop.f32.mrb[0].mxu0
        %v2284 = vadd.f32 0.0, %v2283
        %v2285 = vpop.f32.mrb[0].mxu0
        %v2286 = vpop.f32.mrb[0].mxu0
        %v2287 = vadd.f32 0.0, %v2286
        %v2288 = vpop.f32.mrb[0].mxu0
        %2289 = vmatprep.mubr.bf16.mxu0 0
        %2290 = vmatmul.mubr.bf16.gmra.mrb[0].mxu0 %v2105
        %v2291 = vpop.f32.mrb[0].mxu0
        %v2292 = vadd.f32 0.0, %v2291
        %v2293 = vpop.f32.mrb[0].mxu0
        %v2294 = vpop.f32.mrb[0].mxu0
        %v2295 = vadd.f32 0.0, %v2294
        %v2296 = vpop.f32.mrb[0].mxu0
        %2297 = vmatprep.mubr.bf16.mxu0 0
        %2298 = vmatmul.mubr.bf16.gmra.mrb[0].mxu0 %v2106
        %v2299 = vpop.f32.mrb[0].mxu0
        %v2300 = vadd.f32 0.0, %v2299
        %v2301 = vpop.f32.mrb[0].mxu0
        %v2302 = vpop.f32.mrb[0].mxu0
        %v2303 = vadd.f32 0.0, %v2302
        %v2304 = vpop.f32.mrb[0].mxu0
        %2305 = vmatprep.mubr.bf16.mxu0 0
        %2306 = vmatmul.mubr.bf16.gmra.mrb[0].mxu0 %v2107
        %v2307 = vpop.f32.mrb[0].mxu0
        %v2308 = vadd.f32 0.0, %v2307
        %v2309 = vpop.f32.mrb[0].mxu0
        %v2310 = vpop.f32.mrb[0].mxu0
        %v2311 = vadd.f32 0.0, %v2310
        %v2312 = vpop.f32.mrb[0].mxu0
        %2313 = vmatprep.mubr.bf16.mxu0 0
        %2314 = vmatmul.mubr.bf16.gmra.mrb[0].mxu0 %v2108
        %v2315 = vpop.f32.mrb[0].mxu0
        %v2316 = vadd.f32 0.0, %v2315
        %v2317 = vpop.f32.mrb[0].mxu0
        %v2318 = vpop.f32.mrb[0].mxu0
        %v2319 = vadd.f32 0.0, %v2318
        %v2320 = vpop.f32.mrb[0].mxu0
        %2321 = vmatprep.mubr.bf16.mxu0 0
        %2322 = vmatmul.mubr.bf16.gmra.mrb[0].mxu0 %v2109
        %v2323 = vpop.f32.mrb[0].mxu0
        %v2324 = vadd.f32 0.0, %v2323
        %v2325 = vpop.f32.mrb[0].mxu0
        %v2326 = vpop.f32.mrb[0].mxu0
        %v2327 = vadd.f32 0.0, %v2326
        %v2328 = vpop.f32.mrb[0].mxu0
        %2329 = vmatprep.mubr.bf16.mxu0 0
        %2330 = vmatmul.mubr.bf16.gmra.mrb[0].mxu0 %v2110
        %v2331 = vpop.f32.mrb[0].mxu0
        %v2332 = vadd.f32 0.0, %v2331
        %v2333 = vpop.f32.mrb[0].mxu0
        %v2334 = vpop.f32.mrb[0].mxu0
        %v2335 = vadd.f32 0.0, %v2334
        %v2336 = vpop.f32.mrb[0].mxu0
        %2337 = vmatprep.mubr.bf16.mxu0 0
        %2338 = vmatmul.mubr.bf16.gmra.mrb[0].mxu0 %v2111
        %v2339 = vpop.f32.mrb[0].mxu0
        %v2340 = vadd.f32 0.0, %v2339
        %v2341 = vpop.f32.mrb[0].mxu0
        %v2342 = vpop.f32.mrb[0].mxu0
        %v2343 = vadd.f32 0.0, %v2342
        %v2344 = vpop.f32.mrb[0].mxu0
        %2345 = vmatprep.mubr.bf16.mxu0 0
        %2346 = vmatmul.mubr.bf16.gmra.mrb[0].mxu0 %v2112
        %v2347 = vpop.f32.mrb[0].mxu0
        %v2348 = vadd.f32 0.0, %v2347
        %v2349 = vpop.f32.mrb[0].mxu0
        %v2350 = vpop.f32.mrb[0].mxu0
        %v2351 = vadd.f32 0.0, %v2350
        %v2352 = vpop.f32.mrb[0].mxu0
        %2353 = vmatprep.mubr.bf16.mxu0 0
        %2354 = vmatmul.mubr.bf16.gmra.mrb[0].mxu0 %v2113
        %v2355 = vpop.f32.mrb[0].mxu0
        %v2356 = vadd.f32 0.0, %v2355
        %v2357 = vpop.f32.mrb[0].mxu0
        %v2358 = vpop.f32.mrb[0].mxu0
        %v2359 = vadd.f32 0.0, %v2358
        %v2360 = vpop.f32.mrb[0].mxu0
        %2361 = vmatprep.mubr.bf16.mxu0 0
        %2362 = vmatmul.mubr.bf16.gmra.mrb[0].mxu0 %v2114
        %v2363 = vpop.f32.mrb[0].mxu0
        %v2364 = vadd.f32 0.0, %v2363
        %v2365 = vpop.f32.mrb[0].mxu0
        %v2366 = vpop.f32.mrb[0].mxu0
        %v2367 = vadd.f32 0.0, %v2366
        %v2368 = vpop.f32.mrb[0].mxu0
        %2369 = vmatprep.mubr.bf16.mxu0 0
        %2370 = vmatmul.mubr.bf16.gmra.mrb[0].mxu0 %v2115
        %v2371 = vpop.f32.mrb[0].mxu0
        %v2372 = vadd.f32 0.0, %v2371
        %v2373 = vpop.f32.mrb[0].mxu0
        %v2374 = vpop.f32.mrb[0].mxu0
        %v2375 = vadd.f32 0.0, %v2374
        %v2376 = vpop.f32.mrb[0].mxu0
        %2377 = vmatprep.mubr.bf16.mxu0 0
        %2378 = vmatmul.mubr.bf16.gmra.mrb[0].mxu0 %v2116
        %v2379 = vpop.f32.mrb[0].mxu0
        %v2380 = vadd.f32 0.0, %v2379
        %v2381 = vpop.f32.mrb[0].mxu0
        %v2382 = vpop.f32.mrb[0].mxu0
        %v2383 = vadd.f32 0.0, %v2382
        %v2384 = vpop.f32.mrb[0].mxu0
        %2385 = vmatprep.mubr.bf16.mxu0 0
        %2386 = vmatmul.mubr.bf16.gmra.mrb[0].mxu0 %v2117
        %v2387 = vpop.f32.mrb[0].mxu0
        %v2388 = vadd.f32 0.0, %v2387
        %v2389 = vpop.f32.mrb[0].mxu0
        %v2390 = vpop.f32.mrb[0].mxu0
        %v2391 = vadd.f32 0.0, %v2390
        %v2392 = vpop.f32.mrb[0].mxu0
        %2393 = vmatprep.mubr.bf16.mxu0 0
        %2394 = vmatmul.mubr.bf16.gmra.mrb[0].mxu0 %v2118
        %v2395 = vpop.f32.mrb[0].mxu0
        %v2396 = vadd.f32 0.0, %v2395
        %v2397 = vpop.f32.mrb[0].mxu0
        %v2398 = vpop.f32.mrb[0].mxu0
        %v2399 = vadd.f32 0.0, %v2398
        %v2400 = vpop.f32.mrb[0].mxu0
        %2401 = vmatprep.mubr.bf16.mxu0 0
        %2402 = vmatmul.mubr.bf16.gmra.mrb[0].mxu0 %v2119
        %v2403 = vpop.f32.mrb[0].mxu0
        %v2404 = vadd.f32 0.0, %v2403
        %v2405 = vpop.f32.mrb[0].mxu0
        %v2406 = vpop.f32.mrb[0].mxu0
        %v2407 = vadd.f32 0.0, %v2406
        %v2408 = vpop.f32.mrb[0].mxu0
        %2409 = vmatprep.mubr.bf16.mxu0 0
        %2410 = vmatmul.mubr.bf16.gmra.mrb[0].mxu0 %v2120
        %v2411 = vpop.f32.mrb[0].mxu0
        %v2412 = vadd.f32 0.0, %v2411
        %v2413 = vpop.f32.mrb[0].mxu0
        %v2414 = vpop.f32.mrb[0].mxu0
        %v2415 = vadd.f32 0.0, %v2414
        %v2416 = vpop.f32.mrb[0].mxu0
        %2417 = vmatprep.mubr.bf16.mxu0 0
        %2418 = vmatmul.mubr.bf16.gmra.mrb[0].mxu0 %v2121
        %v2419 = vpop.f32.mrb[0].mxu0
        %v2420 = vadd.f32 0.0, %v2419
        %v2421 = vpop.f32.mrb[0].mxu0
        %v2422 = vpop.f32.mrb[0].mxu0
        %v2423 = vadd.f32 0.0, %v2422
        %v2424 = vpop.f32.mrb[0].mxu0
        %2425 = vmatprep.mubr.bf16.mxu0 0
        %2426 = vmatmul.mubr.bf16.gmra.mrb[0].mxu0 %v2122
        %v2427 = vpop.f32.mrb[0].mxu0
        %v2428 = vadd.f32 0.0, %v2427
        %v2429 = vpop.f32.mrb[0].mxu0
        %v2430 = vpop.f32.mrb[0].mxu0
        %v2431 = vadd.f32 0.0, %v2430
        %v2432 = vpop.f32.mrb[0].mxu0
        %2433 = vmatprep.mubr.bf16.mxu0 0
        %2434 = vmatmul.mubr.bf16.gmra.mrb[0].mxu0 %v2123
        %v2435 = vpop.f32.mrb[0].mxu0
        %v2436 = vadd.f32 0.0, %v2435
        %v2437 = vpop.f32.mrb[0].mxu0
        %v2438 = vpop.f32.mrb[0].mxu0
        %v2439 = vadd.f32 0.0, %v2438
        %v2440 = vpop.f32.mrb[0].mxu0
        %2441 = vmatprep.mubr.bf16.mxu0 0
        %2442 = vmatmul.mubr.bf16.gmra.mrb[0].mxu0 %v2124
        %v2443 = vpop.f32.mrb[0].mxu0
        %v2444 = vadd.f32 0.0, %v2443
        %v2445 = vpop.f32.mrb[0].mxu0
        %v2446 = vpop.f32.mrb[0].mxu0
        %v2447 = vadd.f32 0.0, %v2446
        %v2448 = vpop.f32.mrb[0].mxu0
        %2449 = vmatprep.mubr.bf16.mxu0 0
        %2450 = vmatmul.mubr.bf16.gmra.mrb[0].mxu0 %v2125
        %v2451 = vpop.f32.mrb[0].mxu0
        %v2452 = vadd.f32 0.0, %v2451
        %v2453 = vpop.f32.mrb[0].mxu0
        %v2454 = vpop.f32.mrb[0].mxu0
        %v2455 = vadd.f32 0.0, %v2454
        %v2456 = vpop.f32.mrb[0].mxu0
        %2457 = vmatprep.mubr.bf16.mxu0 0
        %2458 = vmatmul.mubr.bf16.gmra.mrb[0].mxu0 %v2126
        %v2459 = vpop.f32.mrb[0].mxu0
        %v2460 = vadd.f32 0.0, %v2459
        %v2461 = vpop.f32.mrb[0].mxu0
        %v2462 = vpop.f32.mrb[0].mxu0
        %v2463 = vadd.f32 0.0, %v2462
        %v2464 = vpop.f32.mrb[0].mxu0
        %2465 = vmatprep.mubr.bf16.mxu0 0
        %2466 = vmatmul.mubr.bf16.gmra.mrb[0].mxu0 %v2127
        %v2467 = vpop.f32.mrb[0].mxu0
        %v2468 = vadd.f32 0.0, %v2467
        %v2469 = vpop.f32.mrb[0].mxu0
        %v2470 = vpop.f32.mrb[0].mxu0
        %v2471 = vadd.f32 0.0, %v2470
        %v2472 = vpop.f32.mrb[0].mxu0
        %2473 = vmatprep.mubr.bf16.mxu0 0
        %2474 = vmatmul.mubr.bf16.gmra.mrb[0].mxu0 %v2128
        %v2475 = vpop.f32.mrb[0].mxu0
        %v2476 = vadd.f32 0.0, %v2475
        %v2477 = vpop.f32.mrb[0].mxu0
        %v2478 = vpop.f32.mrb[0].mxu0
        %v2479 = vadd.f32 0.0, %v2478
        %v2480 = vpop.f32.mrb[0].mxu0
        %2481 = vdwg.mxu0
        %v2482 = vpack.c.bf16 %v2231, %v2228
        %v2483 = vpack.c.bf16 %v2239, %v2236
        %v2484 = vpack.c.bf16 %v2247, %v2244
        %v2485 = vpack.c.bf16 %v2255, %v2252
        %v2486 = vpack.c.bf16 %v2263, %v2260
        %v2487 = vpack.c.bf16 %v2271, %v2268
        %v2488 = vpack.c.bf16 %v2279, %v2276
        %v2489 = vpack.c.bf16 %v2287, %v2284
        %v2490 = vpack.c.bf16 %v2295, %v2292
        %v2491 = vpack.c.bf16 %v2303, %v2300
        %v2492 = vpack.c.bf16 %v2311, %v2308
        %v2493 = vpack.c.bf16 %v2319, %v2316
        %v2494 = vpack.c.bf16 %v2327, %v2324
        %v2495 = vpack.c.bf16 %v2335, %v2332
        %v2496 = vpack.c.bf16 %v2343, %v2340
        %v2497 = vpack.c.bf16 %v2351, %v2348
        %v2498 = vpack.c.bf16 %v2359, %v2356
        %v2499 = vpack.c.bf16 %v2367, %v2364
        %v2500 = vpack.c.bf16 %v2375, %v2372
        %v2501 = vpack.c.bf16 %v2383, %v2380
        %v2502 = vpack.c.bf16 %v2391, %v2388
        %v2503 = vpack.c.bf16 %v2399, %v2396
        %v2504 = vpack.c.bf16 %v2407, %v2404
        %v2505 = vpack.c.bf16 %v2415, %v2412
        %v2506 = vpack.c.bf16 %v2423, %v2420
        %v2507 = vpack.c.bf16 %v2431, %v2428
        %v2508 = vpack.c.bf16 %v2439, %v2436
        %v2509 = vpack.c.bf16 %v2447, %v2444
        %v2510 = vpack.c.bf16 %v2455, %v2452
        %v2511 = vpack.c.bf16 %v2463, %v2460
        %v2512 = vpack.c.bf16 %v2471, %v2468
        %v2513 = vpack.c.bf16 %v2479, %v2476
        %v2546 = vunpack.c.l.b16 %v2482
        %v2547 = vunpack.c.h.b16 %v2482
        %v2548 = vunpack.c.l.b16 %v2483
        %v2549 = vunpack.c.h.b16 %v2483
        %v2550 = vunpack.c.l.b16 %v2484
        %v2551 = vunpack.c.h.b16 %v2484
        %v2552 = vunpack.c.l.b16 %v2485
        %v2553 = vunpack.c.h.b16 %v2485
        %v2554 = vunpack.c.l.b16 %v2486
        %v2555 = vunpack.c.h.b16 %v2486
        %v2556 = vunpack.c.l.b16 %v2487
        %v2557 = vunpack.c.h.b16 %v2487
        %v2558 = vunpack.c.l.b16 %v2488
        %v2559 = vunpack.c.h.b16 %v2488
        %v2560 = vunpack.c.l.b16 %v2489
        %v2561 = vunpack.c.h.b16 %v2489
        %v2562 = vunpack.c.l.b16 %v2490
        %v2563 = vunpack.c.h.b16 %v2490
        %v2564 = vunpack.c.l.b16 %v2491
        %v2565 = vunpack.c.h.b16 %v2491
        %v2566 = vunpack.c.l.b16 %v2492
        %v2567 = vunpack.c.h.b16 %v2492
        %v2568 = vunpack.c.l.b16 %v2493
        %v2569 = vunpack.c.h.b16 %v2493
        %v2570 = vunpack.c.l.b16 %v2494
        %v2571 = vunpack.c.h.b16 %v2494
        %v2572 = vunpack.c.l.b16 %v2495
        %v2573 = vunpack.c.h.b16 %v2495
        %v2574 = vunpack.c.l.b16 %v2496
        %v2575 = vunpack.c.h.b16 %v2496
        %v2576 = vunpack.c.l.b16 %v2497
        %v2577 = vunpack.c.h.b16 %v2497
        %v2578 = vunpack.c.l.b16 %v2498
        %v2579 = vunpack.c.h.b16 %v2498
        %v2580 = vunpack.c.l.b16 %v2499
        %v2581 = vunpack.c.h.b16 %v2499
        %v2582 = vunpack.c.l.b16 %v2500
        %v2583 = vunpack.c.h.b16 %v2500
        %v2584 = vunpack.c.l.b16 %v2501
        %v2585 = vunpack.c.h.b16 %v2501
        %v2586 = vunpack.c.l.b16 %v2502
        %v2587 = vunpack.c.h.b16 %v2502
        %v2588 = vunpack.c.l.b16 %v2503
        %v2589 = vunpack.c.h.b16 %v2503
        %v2590 = vunpack.c.l.b16 %v2504
        %v2591 = vunpack.c.h.b16 %v2504
        %v2592 = vunpack.c.l.b16 %v2505
        %v2593 = vunpack.c.h.b16 %v2505
        %v2594 = vunpack.c.l.b16 %v2506
        %v2595 = vunpack.c.h.b16 %v2506
        %v2596 = vunpack.c.l.b16 %v2507
        %v2597 = vunpack.c.h.b16 %v2507
        %v2598 = vunpack.c.l.b16 %v2508
        %v2599 = vunpack.c.h.b16 %v2508
        %v2600 = vunpack.c.l.b16 %v2509
        %v2601 = vunpack.c.h.b16 %v2509
        %v2602 = vunpack.c.l.b16 %v2510
        %v2603 = vunpack.c.h.b16 %v2510
        %v2604 = vunpack.c.l.b16 %v2511
        %v2605 = vunpack.c.h.b16 %v2511
        %v2606 = vunpack.c.l.b16 %v2512
        %v2607 = vunpack.c.h.b16 %v2512
        %v2608 = vunpack.c.l.b16 %v2513
        %v2609 = vunpack.c.h.b16 %v2513
        %v2610 = vpack.c.b16 %v2546, %v2546
        %v2611 = vpack.c.b16 %v2547, %v2547
        %v2612 = vpack.c.b16 %v2548, %v2548
        %v2613 = vpack.c.b16 %v2549, %v2549
        %v2614 = vpack.c.b16 %v2550, %v2550
        %v2615 = vpack.c.b16 %v2551, %v2551
        %v2616 = vpack.c.b16 %v2552, %v2552
        %v2617 = vpack.c.b16 %v2553, %v2553
        %v2618 = vpack.c.b16 %v2554, %v2554
        %v2619 = vpack.c.b16 %v2555, %v2555
        %v2620 = vpack.c.b16 %v2556, %v2556
        %v2621 = vpack.c.b16 %v2557, %v2557
        %v2622 = vpack.c.b16 %v2558, %v2558
        %v2623 = vpack.c.b16 %v2559, %v2559
        %v2624 = vpack.c.b16 %v2560, %v2560
        %v2625 = vpack.c.b16 %v2561, %v2561
        %v2626 = vpack.c.b16 %v2562, %v2562
        %v2627 = vpack.c.b16 %v2563, %v2563
        %v2628 = vpack.c.b16 %v2564, %v2564
        %v2629 = vpack.c.b16 %v2565, %v2565
        %v2630 = vpack.c.b16 %v2566, %v2566
        %v2631 = vpack.c.b16 %v2567, %v2567
        %v2632 = vpack.c.b16 %v2568, %v2568
        %v2633 = vpack.c.b16 %v2569, %v2569
        %v2634 = vpack.c.b16 %v2570, %v2570
        %v2635 = vpack.c.b16 %v2571, %v2571
        %v2636 = vpack.c.b16 %v2572, %v2572
        %v2637 = vpack.c.b16 %v2573, %v2573
        %v2638 = vpack.c.b16 %v2574, %v2574
        %v2639 = vpack.c.b16 %v2575, %v2575
        %v2640 = vpack.c.b16 %v2576, %v2576
        %v2641 = vpack.c.b16 %v2577, %v2577
        %v2642 = vpack.c.b16 %v2578, %v2578
        %v2643 = vpack.c.b16 %v2579, %v2579
        %v2644 = vpack.c.b16 %v2580, %v2580
        %v2645 = vpack.c.b16 %v2581, %v2581
        %v2646 = vpack.c.b16 %v2582, %v2582
        %v2647 = vpack.c.b16 %v2583, %v2583
        %v2648 = vpack.c.b16 %v2584, %v2584
        %v2649 = vpack.c.b16 %v2585, %v2585
        %v2650 = vpack.c.b16 %v2586, %v2586
        %v2651 = vpack.c.b16 %v2587, %v2587
        %v2652 = vpack.c.b16 %v2588, %v2588
        %v2653 = vpack.c.b16 %v2589, %v2589
        %v2654 = vpack.c.b16 %v2590, %v2590
        %v2655 = vpack.c.b16 %v2591, %v2591
        %v2656 = vpack.c.b16 %v2592, %v2592
        %v2657 = vpack.c.b16 %v2593, %v2593
        %v2658 = vpack.c.b16 %v2594, %v2594
        %v2659 = vpack.c.b16 %v2595, %v2595
        %v2660 = vpack.c.b16 %v2596, %v2596
        %v2661 = vpack.c.b16 %v2597, %v2597
        %v2662 = vpack.c.b16 %v2598, %v2598
        %v2663 = vpack.c.b16 %v2599, %v2599
        %v2664 = vpack.c.b16 %v2600, %v2600
        %v2665 = vpack.c.b16 %v2601, %v2601
        %v2666 = vpack.c.b16 %v2602, %v2602
        %v2667 = vpack.c.b16 %v2603, %v2603
        %v2668 = vpack.c.b16 %v2604, %v2604
        %v2669 = vpack.c.b16 %v2605, %v2605
        %v2670 = vpack.c.b16 %v2606, %v2606
        %v2671 = vpack.c.b16 %v2607, %v2607
        %v2672 = vpack.c.b16 %v2608, %v2608
        %v2673 = vpack.c.b16 %v2609, %v2609
        %2738 = vst [vmem:[%s432] sm:$0xf] %v2610
        %2739 = vst [vmem:[%s432 + $0x4] sm:$0xf] %v2611
        %2740 = vst [vmem:[%s432 + $0x8] sm:$0xf] %v2612
        %2741 = vst [vmem:[%s432 + $0xc] sm:$0xf] %v2613
        %2742 = vst [vmem:[%s432 + $0x10] sm:$0xf] %v2614
        %2743 = vst [vmem:[%s432 + $0x14] sm:$0xf] %v2615
        %2744 = vst [vmem:[%s432 + $0x18] sm:$0xf] %v2616
        %2745 = vst [vmem:[%s432 + $0x1c] sm:$0xf] %v2617
        %2746 = vst [vmem:[%s432 + $0x20] sm:$0xf] %v2618
        %2747 = vst [vmem:[%s432 + $0x24] sm:$0xf] %v2619
        %2748 = vst [vmem:[%s432 + $0x28] sm:$0xf] %v2620
        %2749 = vst [vmem:[%s432 + $0x2c] sm:$0xf] %v2621
        %2750 = vst [vmem:[%s432 + $0x30] sm:$0xf] %v2622
        %2751 = vst [vmem:[%s432 + $0x34] sm:$0xf] %v2623
        %2752 = vst [vmem:[%s432 + $0x38] sm:$0xf] %v2624
        %2753 = vst [vmem:[%s432 + $0x3c] sm:$0xf] %v2625
        %2754 = vst [vmem:[%s432 + $0x40] sm:$0xf] %v2626
        %2755 = vst [vmem:[%s432 + $0x44] sm:$0xf] %v2627
        %2756 = vst [vmem:[%s432 + $0x48] sm:$0xf] %v2628
        %2757 = vst [vmem:[%s432 + $0x4c] sm:$0xf] %v2629
        %2758 = vst [vmem:[%s432 + $0x50] sm:$0xf] %v2630
        %2759 = vst [vmem:[%s432 + $0x54] sm:$0xf] %v2631
        %2760 = vst [vmem:[%s432 + $0x58] sm:$0xf] %v2632
        %2761 = vst [vmem:[%s432 + $0x5c] sm:$0xf] %v2633
        %2762 = vst [vmem:[%s432 + $0x60] sm:$0xf] %v2634
        %2763 = vst [vmem:[%s432 + $0x64] sm:$0xf] %v2635
        %2764 = vst [vmem:[%s432 + $0x68] sm:$0xf] %v2636
        %2765 = vst [vmem:[%s432 + $0x6c] sm:$0xf] %v2637
        %2766 = vst [vmem:[%s432 + $0x70] sm:$0xf] %v2638
        %2767 = vst [vmem:[%s432 + $0x74] sm:$0xf] %v2639
        %2768 = vst [vmem:[%s432 + $0x78] sm:$0xf] %v2640
        %2769 = vst [vmem:[%s432 + $0x7c] sm:$0xf] %v2641
        %2770 = vst [vmem:[%s432 + $0x80] sm:$0xf] %v2642
        %2771 = vst [vmem:[%s432 + $0x84] sm:$0xf] %v2643
        %2772 = vst [vmem:[%s432 + $0x88] sm:$0xf] %v2644
        %2773 = vst [vmem:[%s432 + $0x8c] sm:$0xf] %v2645
        %2774 = vst [vmem:[%s432 + $0x90] sm:$0xf] %v2646
        %2775 = vst [vmem:[%s432 + $0x94] sm:$0xf] %v2647
        %2776 = vst [vmem:[%s432 + $0x98] sm:$0xf] %v2648
        %2777 = vst [vmem:[%s432 + $0x9c] sm:$0xf] %v2649
        %2778 = vst [vmem:[%s432 + $0xa0] sm:$0xf] %v2650
        %2779 = vst [vmem:[%s432 + $0xa4] sm:$0xf] %v2651
        %2780 = vst [vmem:[%s432 + $0xa8] sm:$0xf] %v2652
        %2781 = vst [vmem:[%s432 + $0xac] sm:$0xf] %v2653
        %2782 = vst [vmem:[%s432 + $0xb0] sm:$0xf] %v2654
        %2783 = vst [vmem:[%s432 + $0xb4] sm:$0xf] %v2655
        %2784 = vst [vmem:[%s432 + $0xb8] sm:$0xf] %v2656
        %2785 = vst [vmem:[%s432 + $0xbc] sm:$0xf] %v2657
        %2786 = vst [vmem:[%s432 + $0xc0] sm:$0xf] %v2658
        %2787 = vst [vmem:[%s432 + $0xc4] sm:$0xf] %v2659
        %2788 = vst [vmem:[%s432 + $0xc8] sm:$0xf] %v2660
        %2789 = vst [vmem:[%s432 + $0xcc] sm:$0xf] %v2661
        %2790 = vst [vmem:[%s432 + $0xd0] sm:$0xf] %v2662
        %2791 = vst [vmem:[%s432 + $0xd4] sm:$0xf] %v2663
        %2792 = vst [vmem:[%s432 + $0xd8] sm:$0xf] %v2664
        %2793 = vst [vmem:[%s432 + $0xdc] sm:$0xf] %v2665
        %2794 = vst [vmem:[%s432 + $0xe0] sm:$0xf] %v2666
        %2795 = vst [vmem:[%s432 + $0xe4] sm:$0xf] %v2667
        %2796 = vst [vmem:[%s432 + $0xe8] sm:$0xf] %v2668
        %2797 = vst [vmem:[%s432 + $0xec] sm:$0xf] %v2669
        %2798 = vst [vmem:[%s432 + $0xf0] sm:$0xf] %v2670
        %2799 = vst [vmem:[%s432 + $0xf4] sm:$0xf] %v2671
        %2800 = vst [vmem:[%s432 + $0xf8] sm:$0xf] %v2672
        %2801 = vst [vmem:[%s432 + $0xfc] sm:$0xf] %v2673
        %s2802 = sand.u32 %s208, 1
        %s2803 = scalar_lea.sflag [#allocation6], %s2802
        %s2804 = sand.u32 %s208, 1
        %s2805 = smul.addr %s2804, 256
        %s2806 = scalar_lea.vmem [#allocation12], %s2805
        // Predicated region
        $region61: #{fused_sense_forward.1} parent=43 // pred_check
          %p2807 = pneg %p218
        $region62: #{fused_sense_forward.1} parent=43 // pred_check_branch
          %2809 = sbr.rel (%p2807) target = $region64
        $region63: #{fused_sense_forward.1} parent=43 // pred_region
          %s2810 = smul.u32 64, %s34
          %s2812 = ssub.s32 4096, 4096
          %2813 = vsyncadd %s2803, %s2812
          %s2814 = smul.addr %s2810, 64
          %s2815 = scalar_lea.hbm %s7, %s2814
          %s2816 = sshll.u32 %s2806, 4
          %s2817 = int_to_ptr.vmem [resolvable:$true] %s2816
          %2822 = dma.vmem_to_hbm [thread:$0]  %s2817, 4096, %s2815, %s2803, 64, 64, 4
        $region64: #{fused_sense_forward.1} parent=43 // pred_fallthru
          _
      $region44: #{fused_sense_forward.1} parent=5 // pred_fallthru
        _
      %p2823 = scmp.le.s32.totalorder 2, %s29
      // Predicated region
      $region65: #{fused_sense_forward.1} parent=5 // pred_check
        %p2824 = pneg %p2823
      $region66: #{fused_sense_forward.1} parent=5 // pred_check_branch
        %2826 = sbr.rel (%p2824) target = $region68
      $region67: #{fused_sense_forward.1} parent=5 // pred_region
        %s2827 = ssub.s32 %s29, 2
        // Predicated region
        $region69: #{fused_sense_forward.1} parent=67 // pred_check
          %p2828 = pneg %p224
        $region70: #{fused_sense_forward.1} parent=67 // pred_check_branch
          %2830 = sbr.rel (%p2828) target = $region72
        $region71: #{fused_sense_forward.1} parent=67 // pred_region
          %s2831 = sand.u32 %s209, 1
          %s2832 = scalar_lea.sflag [#allocation6], %s2831
          %s2833 = sand.u32 %s209, 1
          %s2834 = smul.addr %s2833, 256
          %s2835 = scalar_lea.vmem [#allocation12], %s2834
          %2836 = dma.done %s2832, 4096
        $region72: #{fused_sense_forward.1} parent=67 // pred_fallthru
          _
      $region68: #{fused_sense_forward.1} parent=5 // pred_fallthru
        _
    $region6: #{fused_sense_forward.1} parent=1 // loop_footer
      %s33 = sadd.s32 1, %s29
    $region7: #{fused_sense_forward.1} parent=1 // loop_footer_branch
      %28 = sbr.rel target = $region3
    $region8: #{fused_sense_forward.1} parent=1 // loop_exit
      _
    %2837 = vsyncpa [#allocation5], 1
    %s2838 = scalar_lea.sflag [#allocation5], 1
    %2839 = vsyncpa %s2838, 1
    %2840 = vsyncpa [#allocation8], 1
    %s2841 = scalar_lea.sflag [#allocation8], 1
    %2842 = vsyncpa %s2841, 1
    %2843 = vsyncpa [#allocation11], 1
    %s2844 = scalar_lea.sflag [#allocation11], 1
    %2845 = vsyncpa %s2844, 1
    %2846 = vsyncpa [#allocation6], 1
    %s2847 = scalar_lea.sflag [#allocation6], 1
    %2848 = vsyncpa %s2847, 1

</llo_original>
